<compile_context>
chip_gen: v7x
topology: tpu7x:2x2x1
jax: 0.10.0
libtpu: 0.0.40
codegen_flags: <defaults>
</compile_context>

<pallas_src>
import functools

import jax
import jax.numpy as jnp
from jax.experimental import pallas as pl
from jax.experimental.pallas import tpu as pltpu


# ---------------------------------------------------------------------------
# Generation-aware VMEM budget & tile selection helpers
# ---------------------------------------------------------------------------
def _vmem_budget_bytes():
    """~3/4 of physical VMEM (64 MiB on v7x, 128 MiB on v5e/v6e), capped."""
    cap = 64 * 1024 * 1024  # conservative default = v7x per-TC physical VMEM
    try:
        info = pltpu.get_tpu_info()
        cap = int(getattr(info, "vmem_capacity_bytes", cap))
    except Exception:
        pass
    return int(min(cap * 3 // 4, 96 * 1024 * 1024))


def _pick_tile(n, cap):
    """Largest divisor of n that is <= cap and lane/sublane friendly."""
    cap = max(8, min(cap, n))
    for t in range(cap, 0, -1):
        if n % t == 0 and (t % 128 == 0 or t == n):
            return t
    for t in range(cap, 0, -1):
        if n % t == 0 and t % 16 == 0:   # bf16 sublane tile is 16
            return t
    return n


def _shrink_to_budget(n, cap, fits):
    t = _pick_tile(n, cap)
    while not fits(t):
        if t <= 16:
            break
        nt = _pick_tile(n, max(16, t // 2))
        if nt >= t:
            break
        t = nt
    return t


def _const_spec(shape, index_map):
    """Grid-invariant weight/bias block: single-buffered (frees the 2x VMEM copy)."""
    try:
        return pl.BlockSpec(shape, index_map, pipeline_mode=pl.Buffered(1))
    except (TypeError, ValueError):
        return pl.BlockSpec(shape, index_map)


# ---------------------------------------------------------------------------
# Kernel 1: LayerNorm1 + fused QKV projection (query scale pre-folded into W).
# ---------------------------------------------------------------------------
def _norm1_qkv_kernel(x_ref, g1_ref, b1_ref, wqkv_ref, bqkv_ref, qkv_ref, *, eps):
    x = x_ref[0].astype(jnp.float32)                                    # (T, C)
    mu = jnp.mean(x, axis=-1, keepdims=True)
    var = jnp.mean(jnp.square(x - mu), axis=-1, keepdims=True)
    xn = (x - mu) * jax.lax.rsqrt(var + eps) * g1_ref[...] + b1_ref[...]
    qkv = jnp.dot(xn.astype(jnp.bfloat16), wqkv_ref[...],
                  preferred_element_type=jnp.float32) + bqkv_ref[...]
    qkv_ref[0] = qkv.astype(qkv_ref.dtype)                              # bf16 out


# ---------------------------------------------------------------------------
# Shared tail: output projection + residual + LayerNorm2 + MLP + residual.
# attn is the lane-dense (tq, C) attention output (heads at lane offsets h*hd).
# ---------------------------------------------------------------------------
def _proj_mlp_tail(x_raw, attn_f32, wproj_ref, bproj_ref, g2_ref, b2_ref,
                   wfc1_ref, bfc1_ref, wfc2_ref, bfc2_ref, eps, out_dtype):
    # Single (tq, C) x (C, C) output projection (full-K MXU fill).
    y = jnp.dot(attn_f32.astype(jnp.bfloat16), wproj_ref[...],
                preferred_element_type=jnp.float32) + bproj_ref[...]
    # ---- residual 1 ----
    x1 = x_raw.astype(jnp.float32) + y
    # ---- norm2 ----
    mu = jnp.mean(x1, axis=-1, keepdims=True)
    var = jnp.mean(jnp.square(x1 - mu), axis=-1, keepdims=True)
    xn2 = (x1 - mu) * jax.lax.rsqrt(var + eps) * g2_ref[...] + b2_ref[...]
    # ---- MLP: fc1 -> GELU(tanh approx, EUP) -> fc2 ----
    h1 = jnp.dot(xn2.astype(jnp.bfloat16), wfc1_ref[...],
                 preferred_element_type=jnp.float32) + bfc1_ref[...]
    h1 = jax.nn.gelu(h1, approximate=True)
    h2 = jnp.dot(h1.astype(jnp.bfloat16), wfc2_ref[...],
                 preferred_element_type=jnp.float32) + bfc2_ref[...]
    # ---- residual 2 ----
    return (x1 + h2).astype(out_dtype)


# ---------------------------------------------------------------------------
# Kernel 2a (small N): single-pass softmax attention + tail.
# K/V arrive as one full-N block per (b, qi): no online-softmax bookkeeping.
# ---------------------------------------------------------------------------
def _attn_mlp_single_kernel(x_ref, q_ref, k_ref, v_ref,
                            wproj_ref, bproj_ref, g2_ref, b2_ref,
                            wfc1_ref, bfc1_ref, wfc2_ref, bfc2_ref,
                            o_ref, *, num_heads, eps):
    C = q_ref.shape[2]
    hd = C // num_heads
    q = q_ref[0]      # (tq, C) bf16; query scale folded into wqkv/bqkv
    k = k_ref[0]      # (N,  C) bf16
    v = v_ref[0]      # (N,  C) bf16

    heads = []
    for h in range(num_heads):
        sl = slice(h * hd, (h + 1) * hd)
        s = jax.lax.dot_general(                                    # q_h @ k_h^T
            q[:, sl], k[:, sl],
            dimension_numbers=(((1,), (1,)), ((), ())),
            preferred_element_type=jnp.float32)                     # (tq, N) f32
        s = s - jnp.max(s, axis=-1, keepdims=True)
        p = jnp.exp(s)
        inv_l = pl.reciprocal(jnp.sum(p, axis=-1, keepdims=True), approx=True)
        pv = jnp.dot(p.astype(jnp.bfloat16), v[:, sl],
                     preferred_element_type=jnp.float32)            # (tq, hd)
        heads.append(pv * inv_l)
    attn = jnp.concatenate(heads, axis=-1)                          # (tq, C) lane-dense

    o_ref[0] = _proj_mlp_tail(x_ref[0], attn, wproj_ref, bproj_ref, g2_ref, b2_ref,
                              wfc1_ref, bfc1_ref, wfc2_ref, bfc2_ref, eps,
                              o_ref.dtype)


# ---------------------------------------------------------------------------
# Kernel 2b (large N): flash attention (online softmax over KV tiles) + tail.
# Lane-dense (tq, C) accumulator; per-head m/l statistics; full-width rescale.
# ---------------------------------------------------------------------------
def _attn_mlp_flash_kernel(x_ref, q_ref, k_ref, v_ref,
                           wproj_ref, bproj_ref, g2_ref, b2_ref,
                           wfc1_ref, bfc1_ref, wfc2_ref, bfc2_ref,
                           o_ref,
                           m_sc, l_sc, acc_sc,
                           *, num_heads, eps):
    ki = pl.program_id(2)
    nk = pl.num_programs(2)
    tq, C = q_ref.shape[1], q_ref.shape[2]
    hd = C // num_heads

    @pl.when(ki == 0)
    def _init():
        m_sc[...] = jnp.full(m_sc.shape, -jnp.inf, dtype=jnp.float32)
        l_sc[...] = jnp.zeros(l_sc.shape, dtype=jnp.float32)
        acc_sc[...] = jnp.zeros(acc_sc.shape, dtype=jnp.float32)

    q = q_ref[0]      # (tq, C) bf16
    k = k_ref[0]      # (tk, C) bf16
    v = v_ref[0]      # (tk, C) bf16

    alpha_parts, pv_parts = [], []
    for h in range(num_heads):
        sl = slice(h * hd, (h + 1) * hd)
        s = jax.lax.dot_general(                                    # q_h @ k_h^T
            q[:, sl], k[:, sl],
            dimension_numbers=(((1,), (1,)), ((), ())),
            preferred_element_type=jnp.float32)                     # (tq, tk) f32
        m_prev_h = m_sc[h]                                          # (tq, 1)
        m_new_h = jnp.maximum(m_prev_h, jnp.max(s, axis=-1, keepdims=True))
        alpha_h = jnp.exp(m_prev_h - m_new_h)                       # (tq, 1)
        p = jnp.exp(s - m_new_h)                                    # (tq, tk)
        l_sc[h] = alpha_h * l_sc[h] + jnp.sum(p, axis=-1, keepdims=True)
        m_sc[h] = m_new_h
        pv_parts.append(jnp.dot(p.astype(jnp.bfloat16), v[:, sl],
                                preferred_element_type=jnp.float32))  # (tq, hd)
        alpha_parts.append(jnp.broadcast_to(alpha_h, (tq, hd)))

    # One full-width accumulator rescale + update (lane-dense (tq, C)).
    acc_sc[...] = (jnp.concatenate(alpha_parts, axis=-1) * acc_sc[...]
                   + jnp.concatenate(pv_parts, axis=-1))

    @pl.when(ki == nk - 1)
    def _finalize():
        inv = jnp.concatenate(
            [jnp.broadcast_to(pl.reciprocal(l_sc[h], approx=True), (tq, hd))
             for h in range(num_heads)], axis=-1)                   # (tq, C)
        attn = acc_sc[...] * inv
        o_ref[0] = _proj_mlp_tail(x_ref[0], attn, wproj_ref, bproj_ref, g2_ref,
                                  b2_ref, wfc1_ref, bfc1_ref, wfc2_ref, bfc2_ref,
                                  eps, o_ref.dtype)


# ---------------------------------------------------------------------------
# Wrapper
# ---------------------------------------------------------------------------
def gcl_block_forward(x, feat_shape, params, *, num_heads, eps=1e-5,
                      force_flash=False, max_q_tile=256, max_kv_tile=256):
    """x: (B, H*W, C) float32; feat_shape: (B, C, H, W). Returns (B, H*W, C)."""
    B, N, C = x.shape
    Bf, Cf, H, W = feat_shape
    assert Bf == B and Cf == C and H * W == N
    assert C % num_heads == 0, "C must be divisible by num_heads"
    assert C % 128 == 0, "lane-dense channel dim required (C % 128 == 0)"
    hidden = params["wfc1"].shape[1]
    budget = _vmem_budget_bytes()

    # ---- kernel 1: norm1 + qkv projection -> (B, N, 3C) bf16 ----
    def k1_bytes(t):
        return (2 * (t * C * 4 + t * 3 * C * 2)      # double-buffered x / qkv tiles
                + 2 * C * 3 * C                      # bf16 wqkv (single-buffered)
                + 4 * 8 * C)                         # f32 vectors
    tq1 = _shrink_to_budget(N, 1024, lambda t: k1_bytes(t) <= budget)
    nq1 = N // tq1

    k1_cost = pl.CostEstimate(
        flops=int(2 * B * N * C * 3 * C + 10 * B * N * C),
        transcendentals=int(B * N),
        bytes_accessed=int(B * N * C * 4 + B * N * 3 * C * 2 + C * 3 * C * 2),
    )
    qkv = pl.pallas_call(
        functools.partial(_norm1_qkv_kernel, eps=eps),
        out_shape=jax.ShapeDtypeStruct((B, N, 3 * C), jnp.bfloat16),
        grid_spec=pltpu.PrefetchScalarGridSpec(
            num_scalar_prefetch=0,
            grid=(B, nq1),
            in_specs=[
                pl.BlockSpec((1, tq1, C), lambda b, i: (b, i, 0)),       # x
                _const_spec((1, C), lambda b, i: (0, 0)),                # gamma1
                _const_spec((1, C), lambda b, i: (0, 0)),                # beta1
                _const_spec((C, 3 * C), lambda b, i: (0, 0)),            # wqkv bf16
                _const_spec((1, 3 * C), lambda b, i: (0, 0)),            # bqkv
            ],
            out_specs=pl.BlockSpec((1, tq1, 3 * C), lambda b, i: (b, i, 0)),
        ),
        compiler_params=pltpu.CompilerParams(
            dimension_semantics=("parallel", "parallel"),
            vmem_limit_bytes=budget),
        cost_estimate=k1_cost,
    )(x, params["g1"], params["b1"], params["wqkv"], params["bqkv"])

    # ---- kernel 2: attention + proj + residual + norm2 + MLP + residual ----
    def k2_bytes(tq, tk):
        blocks = 2 * (tq * C * 4            # x tile (f32)
                      + tq * C * 2          # q tile (bf16)
                      + 2 * tk * C * 2      # k, v tiles (bf16)
                      + tq * C * 4)         # out tile (f32)
        weights = 2 * (C * C + 2 * C * hidden) + 4 * (6 * C + 2 * hidden)
        scratch = tq * C * 4 + 2 * num_heads * tq * 128 * 4
        return blocks + weights + scratch

    tq2 = _shrink_to_budget(N, max_q_tile, lambda t: k2_bytes(t, 128) <= budget)
    nq2 = N // tq2
    weight_args = (params["wproj"], params["bproj"], params["g2"], params["b2"],
                   params["wfc1"], params["bfc1"], params["wfc2"], params["bfc2"])
    wshapes = [(C, C), (1, C), (1, C), (1, C),
               (C, hidden), (1, hidden), (hidden, C), (1, C)]

    flops_k2 = int(B * (4 * N * N * C + 2 * N * C * C + 4 * N * C * hidden))
    trans_k2 = int(B * num_heads * N * N + B * N * hidden + 2 * B * N)
    # K/V are re-streamed once per query tile (factor nq2).
    bytes_k2 = int(2 * B * N * C * 4 + B * N * C * 2
                   + 2 * B * N * C * 2 * nq2
                   + 2 * (C * C + 2 * C * hidden))
    k2_cost = pl.CostEstimate(flops=flops_k2, transcendentals=trans_k2,
                              bytes_accessed=bytes_k2)

    single_pass = (not force_flash) and (N <= 4096) and (k2_bytes(tq2, N) <= budget)

    if single_pass:
        # Small-N path: full-N K/V block, no KV grid axis, plain softmax.
        out = pl.pallas_call(
            functools.partial(_attn_mlp_single_kernel, num_heads=num_heads, eps=eps),
            out_shape=jax.ShapeDtypeStruct((B, N, C), x.dtype),
            grid_spec=pltpu.PrefetchScalarGridSpec(
                num_scalar_prefetch=0,
                grid=(B, nq2),   # B*nq2 >= 2 keeps both v7x TCs busy
                in_specs=[
                    pl.BlockSpec((1, tq2, C), lambda b, qi: (b, qi, 0)),  # x residual
                    pl.BlockSpec((1, tq2, C), lambda b, qi: (b, qi, 0)),  # q
                    pl.BlockSpec((1, N, C), lambda b, qi: (b, 0, 1)),     # k (full N)
                    pl.BlockSpec((1, N, C), lambda b, qi: (b, 0, 2)),     # v (full N)
                ] + [_const_spec(s, lambda b, qi: (0, 0)) for s in wshapes],
                out_specs=pl.BlockSpec((1, tq2, C), lambda b, qi: (b, qi, 0)),
            ),
            compiler_params=pltpu.CompilerParams(
                dimension_semantics=("parallel", "parallel"),
                vmem_limit_bytes=budget),
            cost_estimate=k2_cost,
        )(x, qkv, qkv, qkv, *weight_args)
    else:
        tk2 = _shrink_to_budget(N, max_kv_tile, lambda t: k2_bytes(tq2, t) <= budget)
        nk2 = N // tk2
        out = pl.pallas_call(
            functools.partial(_attn_mlp_flash_kernel, num_heads=num_heads, eps=eps),
            out_shape=jax.ShapeDtypeStruct((B, N, C), x.dtype),
            grid_spec=pltpu.PrefetchScalarGridSpec(
                num_scalar_prefetch=0,
                grid=(B, nq2, nk2),
                in_specs=[
                    pl.BlockSpec((1, tq2, C), lambda b, qi, ki: (b, qi, 0)),  # x
                    pl.BlockSpec((1, tq2, C), lambda b, qi, ki: (b, qi, 0)),  # q
                    pl.BlockSpec((1, tk2, C), lambda b, qi, ki: (b, ki, 1)),  # k
                    pl.BlockSpec((1, tk2, C), lambda b, qi, ki: (b, ki, 2)),  # v
                ] + [_const_spec(s, lambda b, qi, ki: (0, 0)) for s in wshapes],
                out_specs=pl.BlockSpec((1, tq2, C), lambda b, qi, ki: (b, qi, 0)),
                scratch_shapes=[
                    pltpu.VMEM((num_heads, tq2, 1), jnp.float32),   # running max
                    pltpu.VMEM((num_heads, tq2, 1), jnp.float32),   # running denom
                    pltpu.VMEM((tq2, C), jnp.float32),              # lane-dense acc
                ],
            ),
            compiler_params=pltpu.CompilerParams(
                dimension_semantics=("parallel", "parallel", "arbitrary"),
                vmem_limit_bytes=budget),
            cost_estimate=k2_cost,
        )(x, qkv, qkv, qkv, *weight_args)
    return out


# ---------------------------------------------------------------------------
# Parameters
# ---------------------------------------------------------------------------
def init_params(key, dim, mlp_ratio=4.0):
    hidden = int(dim * mlp_ratio)
    ks = jax.random.split(key, 4)
    std = 0.02
    return {
        "g1": jnp.ones((1, dim), jnp.float32),
        "b1": jnp.zeros((1, dim), jnp.float32),
        "g2": jnp.ones((1, dim), jnp.float32),
        "b2": jnp.zeros((1, dim), jnp.float32),
        # weights stored pre-transposed: y = x @ W + b
        "wqkv": (std * jax.random.normal(ks[0], (dim, 3 * dim))).astype(jnp.float32),
        "bqkv": jnp.zeros((1, 3 * dim), jnp.float32),
        "wproj": (std * jax.random.normal(ks[1], (dim, dim))).astype(jnp.float32),
        "bproj": jnp.zeros((1, dim), jnp.float32),
        "wfc1": (std * jax.random.normal(ks[2], (dim, hidden))).astype(jnp.float32),
        "bfc1": jnp.zeros((1, hidden), jnp.float32),
        "wfc2": (std * jax.random.normal(ks[3], (hidden, dim))).astype(jnp.float32),
        "bfc2": jnp.zeros((1, dim), jnp.float32),
    }


def prepare_params(raw, num_heads):
    """Fold the 1/sqrt(head_dim) query scale into the qkv projection and cast
    the matmul weights to bf16 (halves HBM->VMEM bytes, hits MXU bf16 rate).
    Biases / LayerNorm affine stay f32 (added post-matmul in f32)."""
    C = raw["wproj"].shape[0]
    hd = C // num_heads
    scale = hd ** -0.5
    col_scale = jnp.concatenate(
        [jnp.full((C,), scale, jnp.float32), jnp.ones((2 * C,), jnp.float32)])
    p = dict(raw)
    p["wqkv"] = (raw["wqkv"] * col_scale[None, :]).astype(jnp.bfloat16)
    p["bqkv"] = raw["bqkv"] * col_scale[None, :]
    p["wproj"] = raw["wproj"].astype(jnp.bfloat16)
    p["wfc1"] = raw["wfc1"].astype(jnp.bfloat16)
    p["wfc2"] = raw["wfc2"].astype(jnp.bfloat16)
    return p


# ---------------------------------------------------------------------------
# Pure-JAX reference (same math, standard softmax) for a correctness check.
# ---------------------------------------------------------------------------
def gcl_block_reference(x, params, num_heads, eps=1e-5):
    B, N, C = x.shape
    hd = C // num_heads
    f = lambda a: a.astype(jnp.float32)

    def ln(t, g, b):
        mu = jnp.mean(t, -1, keepdims=True)
        var = jnp.mean(jnp.square(t - mu), -1, keepdims=True)
        return (t - mu) * jax.lax.rsqrt(var + eps) * g + b

    xn = ln(x, f(params["g1"]), f(params["b1"]))
    qkv = xn @ f(params["wqkv"]) + f(params["bqkv"])     # scale already folded
    q, k, v = jnp.split(qkv, 3, axis=-1)
    split = lambda t: t.reshape(B, N, num_heads, hd).transpose(0, 2, 1, 3)
    q, k, v = split(q), split(k), split(v)
    s = jnp.einsum("bhqd,bhkd->bhqk", q, k)
    p = jax.nn.softmax(s, axis=-1)
    a = jnp.einsum("bhqk,bhkd->bhqd", p, v)
    a = a.transpose(0, 2, 1, 3).reshape(B, N, C)
    x1 = x + (a @ f(params["wproj"]) + f(params["bproj"]))
    xn2 = ln(x1, f(params["g2"]), f(params["b2"]))
    h1 = jax.nn.gelu(xn2 @ f(params["wfc1"]) + f(params["bfc1"]), approximate=True)
    return x1 + (h1 @ f(params["wfc2"]) + f(params["bfc2"]))


if __name__ == "__main__":
    # Small but lane-dense shapes (C multiple of 128 keeps every store unmasked).
    B, C, H, W = 2, 128, 16, 16
    num_heads = 4
    N = H * W

    key = jax.random.PRNGKey(0)
    kx, kp = jax.random.split(key)
    x = jax.random.normal(kx, (B, N, C), dtype=jnp.float32)
    feat_shape = (B, C, H, W)
    params = prepare_params(init_params(kp, C, mlp_ratio=4.0), num_heads)

    ref = gcl_block_reference(x, params, num_heads)

    # Default path: small N -> single-pass attention (no KV grid axis).
    out = jax.block_until_ready(
        gcl_block_forward(x, feat_shape, params, num_heads=num_heads))
    assert out.shape == (B, N, C) and out.dtype == x.dtype
    assert bool(jnp.all(jnp.isfinite(out)))
    assert bool(jnp.allclose(out, ref, atol=3e-2, rtol=3e-2)), \
        float(jnp.max(jnp.abs(out - ref)))

    # Flash (tiled-KV online-softmax) path, exercised explicitly for coverage.
    out_f = jax.block_until_ready(
        gcl_block_forward(x, feat_shape, params, num_heads=num_heads,
                          force_flash=True, max_kv_tile=128))
    assert bool(jnp.all(jnp.isfinite(out_f)))
    assert bool(jnp.allclose(out_f, ref, atol=3e-2, rtol=3e-2)), \
        float(jnp.max(jnp.abs(out_f - ref)))

    print("KERNEL_OK")
</pallas_src>

<mosaic_0001>
module attributes {stable_mosaic.version = 11 : i64} {
  func.func @_norm1_qkv_kernel(%arg0: i32, %arg1: i32, %arg2: memref<1x256x128xf32, #tpu.memory_space<vmem>>, %arg3: memref<1x128xf32, #tpu.memory_space<vmem>>, %arg4: memref<1x128xf32, #tpu.memory_space<vmem>>, %arg5: memref<128x384xbf16, #tpu.memory_space<vmem>>, %arg6: memref<1x384xf32, #tpu.memory_space<vmem>>, %arg7: memref<1x256x384xbf16, #tpu.memory_space<vmem>>) attributes {dimension_semantics = [#tpu.dimension_semantics<parallel>, #tpu.dimension_semantics<parallel>], iteration_bounds = array<i64: 2, 1>, scalar_prefetch = 0 : i64, scratch_operands = 0 : i64, tpu.core_type = #tpu.core_type<tc>, window_params = [{transform_indices = @transform_0, window_bounds = array<i64: 1, 256, 128>}, {pipeline_mode = #tpu.pipeline_mode<synchronous>, transform_indices = @transform_1, window_bounds = array<i64: 1, 128>}, {pipeline_mode = #tpu.pipeline_mode<synchronous>, transform_indices = @transform_2, window_bounds = array<i64: 1, 128>}, {pipeline_mode = #tpu.pipeline_mode<synchronous>, transform_indices = @transform_3, window_bounds = array<i64: 128, 384>}, {pipeline_mode = #tpu.pipeline_mode<synchronous>, transform_indices = @transform_4, window_bounds = array<i64: 1, 384>}, {transform_indices = @transform_5, window_bounds = array<i64: 1, 256, 384>}]} {
    %c0 = arith.constant 0 : index
    %c0_0 = arith.constant 0 : index
    %c0_1 = arith.constant 0 : index
    %0 = vector.load %arg2[%c0, %c0_0, %c0_1] : memref<1x256x128xf32, #tpu.memory_space<vmem>>, vector<1x256x128xf32>
    %1 = vector.shape_cast %0 : vector<1x256x128xf32> to vector<256x128xf32>
    %cst = arith.constant dense<0.000000e+00> : vector<256xf32>
    %2 = vector.multi_reduction <add>, %1, %cst [1] : vector<256x128xf32> to vector<256xf32>
    %3 = vector.shape_cast %2 : vector<256xf32> to vector<256x1xf32>
    %cst_2 = arith.constant 1.280000e+02 : f32
    %4 = vector.broadcast %cst_2 : f32 to vector<256x1xf32>
    %5 = arith.divf %3, %4 : vector<256x1xf32>
    %6 = vector.broadcast %5 : vector<256x1xf32> to vector<256x128xf32>
    %7 = arith.subf %1, %6 : vector<256x128xf32>
    %8 = arith.mulf %7, %7 : vector<256x128xf32>
    %cst_3 = arith.constant dense<0.000000e+00> : vector<256xf32>
    %9 = vector.multi_reduction <add>, %8, %cst_3 [1] : vector<256x128xf32> to vector<256xf32>
    %10 = vector.shape_cast %9 : vector<256xf32> to vector<256x1xf32>
    %cst_4 = arith.constant 1.280000e+02 : f32
    %11 = vector.broadcast %cst_4 : f32 to vector<256x1xf32>
    %12 = arith.divf %10, %11 : vector<256x1xf32>
    %13 = vector.broadcast %5 : vector<256x1xf32> to vector<256x128xf32>
    %14 = arith.subf %1, %13 : vector<256x128xf32>
    %cst_5 = arith.constant 9.99999974E-6 : f32
    %15 = vector.broadcast %cst_5 : f32 to vector<256x1xf32>
    %16 = arith.addf %12, %15 : vector<256x1xf32>
    %17 = math.rsqrt %16 : vector<256x1xf32>
    %18 = vector.broadcast %17 : vector<256x1xf32> to vector<256x128xf32>
    %19 = arith.mulf %14, %18 : vector<256x128xf32>
    %c0_6 = arith.constant 0 : index
    %c0_7 = arith.constant 0 : index
    %20 = vector.load %arg3[%c0_6, %c0_7] : memref<1x128xf32, #tpu.memory_space<vmem>>, vector<1x128xf32>
    %21 = vector.broadcast %20 : vector<1x128xf32> to vector<256x128xf32>
    %22 = arith.mulf %19, %21 : vector<256x128xf32>
    %c0_8 = arith.constant 0 : index
    %c0_9 = arith.constant 0 : index
    %23 = vector.load %arg4[%c0_8, %c0_9] : memref<1x128xf32, #tpu.memory_space<vmem>>, vector<1x128xf32>
    %24 = vector.broadcast %23 : vector<1x128xf32> to vector<256x128xf32>
    %25 = arith.addf %22, %24 : vector<256x128xf32>
    %26 = arith.truncf %25 : vector<256x128xf32> to vector<256x128xbf16>
    %c0_10 = arith.constant 0 : index
    %c0_11 = arith.constant 0 : index
    %27 = vector.load %arg5[%c0_10, %c0_11] : memref<128x384xbf16, #tpu.memory_space<vmem>>, vector<128x384xbf16>
    %cst_12 = arith.constant dense<0.000000e+00> : vector<256x384xf32>
    %28 = tpu.matmul %26, %27, %cst_12 {dimension_numbers = #tpu.dot_dimension_numbers<[1], [0], [0], [1], [0, 0, 1, 1], [], []>} : vector<256x128xbf16>, vector<128x384xbf16>, vector<256x384xf32> -> vector<256x384xf32>
    %c0_13 = arith.constant 0 : index
    %c0_14 = arith.constant 0 : index
    %29 = vector.load %arg6[%c0_13, %c0_14] : memref<1x384xf32, #tpu.memory_space<vmem>>, vector<1x384xf32>
    %30 = vector.broadcast %29 : vector<1x384xf32> to vector<256x384xf32>
    %31 = arith.addf %28, %30 : vector<256x384xf32>
    %32 = arith.truncf %31 : vector<256x384xf32> to vector<256x384xbf16>
    %c0_15 = arith.constant 0 : index
    %c0_16 = arith.constant 0 : index
    %c0_17 = arith.constant 0 : index
    %33 = vector.load %arg7[%c0_15, %c0_16, %c0_17] : memref<1x256x384xbf16, #tpu.memory_space<vmem>>, vector<1x256x384xbf16>
    %34 = vector.shape_cast %33 : vector<1x256x384xbf16> to vector<256x384xbf16>
    %35 = vector.shape_cast %32 : vector<256x384xbf16> to vector<1x256x384xbf16>
    tpu.vector_store %arg7[%c0_15, %c0_16, %c0_17], %35 {strides = array<i32>} : memref<1x256x384xbf16, #tpu.memory_space<vmem>>, vector<1x256x384xbf16>,
    return
  }
  func.func @transform_0(%arg0: i32, %arg1: i32) -> (i32, i32, i32) {
    %c0_i32 = arith.constant 0 : i32
    %c0_i32_0 = arith.constant 0 : i32
    return %arg0, %arg1, %c0_i32 : i32, i32, i32
  }
  func.func @transform_1(%arg0: i32, %arg1: i32) -> (i32, i32) {
    %c0_i32 = arith.constant 0 : i32
    %c0_i32_0 = arith.constant 0 : i32
    %c0_i32_1 = arith.constant 0 : i32
    return %c0_i32, %c0_i32_0 : i32, i32
  }
  func.func @transform_2(%arg0: i32, %arg1: i32) -> (i32, i32) {
    %c0_i32 = arith.constant 0 : i32
    %c0_i32_0 = arith.constant 0 : i32
    %c0_i32_1 = arith.constant 0 : i32
    return %c0_i32, %c0_i32_0 : i32, i32
  }
  func.func @transform_3(%arg0: i32, %arg1: i32) -> (i32, i32) {
    %c0_i32 = arith.constant 0 : i32
    %c0_i32_0 = arith.constant 0 : i32
    %c0_i32_1 = arith.constant 0 : i32
    return %c0_i32, %c0_i32_0 : i32, i32
  }
  func.func @transform_4(%arg0: i32, %arg1: i32) -> (i32, i32) {
    %c0_i32 = arith.constant 0 : i32
    %c0_i32_0 = arith.constant 0 : i32
    %c0_i32_1 = arith.constant 0 : i32
    return %c0_i32, %c0_i32_0 : i32, i32
  }
  func.func @transform_5(%arg0: i32, %arg1: i32) -> (i32, i32, i32) {
    %c0_i32 = arith.constant 0 : i32
    %c0_i32_0 = arith.constant 0 : i32
    return %arg0, %arg1, %c0_i32 : i32, i32, i32
  }
}

</mosaic_0001>

<llo_original>
// kernel: tpu_custom_call.1
$region0: #{tpu_custom_call.1}
  #allocation0 [shape = 'u32[]', space=smem, size = 0x4, offset = 0x4, fixed_abs, tag = 'smem constant byte address 0x4 - core index']
  #allocation1 [shape = 'u32[144,128]{1,0:T(1,128)}', space=vmem, size = 0x12000, scoped, tag = 'internal scratch']
  %s0 = inlined_call_operand.hbm [shape: f32[2,256,128], index: 0, kind: input, shape index: {}]
  %s1 = inlined_call_operand.vmem [shape: f32[1,128], index: 1, kind: input, shape index: {}]
  %s2 = inlined_call_operand.vmem [shape: f32[1,128], index: 2, kind: input, shape index: {}]
  %s3 = inlined_call_operand.hbm [shape: bf16[128,384], index: 3, kind: input, shape index: {}]
  %s4 = inlined_call_operand.vmem [shape: f32[1,384], index: 4, kind: input, shape index: {}]
  %s5 = inlined_call_operand.hbm [shape: bf16[2,256,384], index: 5, kind: output, shape index: {}]
  %s6 = sld [smem:[#allocation0]]
  $region61: #{tpu_custom_call.1} parent=0
    _
  %s8 = ssub.s32 1, %s6
  %s9 = scalar_select 0, %s8, %s6
  $region1: #{tpu_custom_call.1} parent=0
    #allocation2 [shape = 'u8[262144]{0}', space=vmem, size = 0x40000, scoped, tag = 'input window, operand 0']
    #allocation3 [shape = 's32[2]{0}', space=sflag, size = 0x8, scoped, tag = 'scoped memory for tpu_custom_call.1']
    #allocation4 [shape = 's32[2]{0}', space=sflag, size = 0x8, scoped, tag = 'scoped memory for tpu_custom_call.1']
    #allocation5 [shape = 'u8[98304]{0}', space=vmem, size = 0x18000, scoped, tag = 'input window, operand 3, single buffered']
    #allocation6 [shape = 's32[1]{0}', space=sflag, size = 0x4, scoped, tag = 'scoped memory for tpu_custom_call.1']
    #allocation7 [shape = 'u8[393216]{0}', space=vmem, size = 0x60000, scoped, tag = 'output window, operand 0']
    %10 = vsyncpa [#allocation3], 0
    %s11 = scalar_lea.sflag [#allocation3], 1
    %12 = vsyncpa %s11, 0
    %13 = vsyncpa [#allocation6], 0
    %14 = vsyncpa [#allocation4], 0
    %s15 = scalar_lea.sflag [#allocation4], 1
    %16 = vsyncpa %s15, 0
    loop: start=0, step=1, limit=4
    $region2: #{tpu_custom_call.1} parent=1 // loop_pre_header
      _
    $region3: #{tpu_custom_call.1} parent=1 // loop_header
      %s18 = sphi 0, %s22
      %p19 = scmp.ge.s32.totalorder %s18, 4
      %s25 = sphi 0, %s37
      %s26 = sphi 0, %s33
      %s27 = sphi 0, %s25
      %s28 = sphi 0, %s26
      %s29 = sphi 0, %s27
      %s30 = sphi 0, %s28
      %s42 = sphi 0, %s44
      %s45 = sphi 0, %s42
      %s46 = sphi 0, %s45
      %s62 = sphi 0, %s46
      %s66 = sphi 0, %s66
      %s68 = sphi 0, %s66
      %s69 = sphi 0, %s68
      %s83 = sphi 0, %s69
      %s87 = sphi 0, %s87
      %s89 = sphi 0, %s87
      %s90 = sphi 0, %s89
      %s104 = sphi 0, %s90
      %s108 = sphi 0, %s108
      %s110 = sphi 0, %s108
      %s111 = sphi 0, %s110
      %s125 = sphi 0, %s111
      %s129 = sphi 0, %s129
      %s131 = sphi 0, %s129
      %s132 = sphi 0, %s131
      %s146 = sphi 0, %s132
      %s154 = sphi 0, %s156
      %s157 = sphi 0, %s154
      %s158 = sphi 0, %s157
      %s174 = sphi 0, %s158
    $region4: #{tpu_custom_call.1} parent=1 // loop_header_branch
      %21 = sbr.rel (%p19) target = $region8
    $region5: #{tpu_custom_call.1} parent=1 // loop_body
      %s23 = ssub.s32 %s18, 1
      %s24 = ssub.s32 %s18, 2
      %s31 = sadd.s32 1, %s26
      %p32 = scmp.ge.s32.totalorder %s31, 1
      %s33 = scalar_select %p32, 0, %s31
      %s34 = sadd.s32 1, %s25
      %s35 = scalar_select %p32, %s34, %s25
      %p36 = scmp.ge.s32.totalorder %s35, 2
      %s37 = scalar_select %p36, 0, %s35
      %s38 = ssub.s32 %s25, %s37
      %s39 = ssub.s32 %s26, %s33
      %s40 = sor.u32 %s38, %s39
      %p41 = scmp.eq.s32.totalorder %s40, 0
      %s43 = sadd.s32 %s42, 1
      %s44 = scalar_select %p41, %s42, %s43
      %p47 = pneg %p41
      %p48 = scmp.eq.s32.totalorder %s18, 1
      %p49 = por %p47, %p48
      %p50 = scmp.ne.s32.totalorder %s42, %s45
      %p51 = scmp.eq.s32.totalorder %s18, 0
      %p52 = por %p50, %p51
      %p53 = scmp.ne.s32.totalorder %s42, %s45
      %p54 = scmp.eq.s32.totalorder %s23, 1
      %p55 = por %p53, %p54
      %p56 = scmp.ne.s32.totalorder %s45, %s46
      %p57 = scmp.eq.s32.totalorder %s23, 0
      %p58 = por %p56, %p57
      %p59 = scmp.ne.s32.totalorder %s45, %s46
      %p60 = scmp.eq.s32.totalorder %s24, 1
      %p61 = por %p59, %p60
      %p63 = scmp.ne.s32.totalorder %s46, %s62
      %p64 = scmp.eq.s32.totalorder %s24, 0
      %p65 = por %p63, %p64
      %s67 = sadd.s32 %s66, 1
      %p70 = scmp.eq.s32.totalorder %s18, 1
      %p71 = scmp.ne.s32.totalorder %s66, %s68
      %p72 = scmp.eq.s32.totalorder %s18, 0
      %p73 = por %p71, %p72
      %p74 = scmp.ne.s32.totalorder %s66, %s68
      %p75 = scmp.eq.s32.totalorder %s23, 1
      %p76 = por %p74, %p75
      %p77 = scmp.ne.s32.totalorder %s68, %s69
      %p78 = scmp.eq.s32.totalorder %s23, 0
      %p79 = por %p77, %p78
      %p80 = scmp.ne.s32.totalorder %s68, %s69
      %p81 = scmp.eq.s32.totalorder %s24, 1
      %p82 = por %p80, %p81
      %p84 = scmp.ne.s32.totalorder %s69, %s83
      %p85 = scmp.eq.s32.totalorder %s24, 0
      %p86 = por %p84, %p85
      %s88 = sadd.s32 %s87, 1
      %p91 = scmp.eq.s32.totalorder %s18, 1
      %p92 = scmp.ne.s32.totalorder %s87, %s89
      %p93 = scmp.eq.s32.totalorder %s18, 0
      %p94 = por %p92, %p93
      %p95 = scmp.ne.s32.totalorder %s87, %s89
      %p96 = scmp.eq.s32.totalorder %s23, 1
      %p97 = por %p95, %p96
      %p98 = scmp.ne.s32.totalorder %s89, %s90
      %p99 = scmp.eq.s32.totalorder %s23, 0
      %p100 = por %p98, %p99
      %p101 = scmp.ne.s32.totalorder %s89, %s90
      %p102 = scmp.eq.s32.totalorder %s24, 1
      %p103 = por %p101, %p102
      %p105 = scmp.ne.s32.totalorder %s90, %s104
      %p106 = scmp.eq.s32.totalorder %s24, 0
      %p107 = por %p105, %p106
      %s109 = sadd.s32 %s108, 1
      %p112 = scmp.eq.s32.totalorder %s18, 1
      %p113 = scmp.ne.s32.totalorder %s108, %s110
      %p114 = scmp.eq.s32.totalorder %s18, 0
      %p115 = por %p113, %p114
      %p116 = scmp.ne.s32.totalorder %s108, %s110
      %p117 = scmp.eq.s32.totalorder %s23, 1
      %p118 = por %p116, %p117
      %p119 = scmp.ne.s32.totalorder %s110, %s111
      %p120 = scmp.eq.s32.totalorder %s23, 0
      %p121 = por %p119, %p120
      %p122 = scmp.ne.s32.totalorder %s110, %s111
      %p123 = scmp.eq.s32.totalorder %s24, 1
      %p124 = por %p122, %p123
      %p126 = scmp.ne.s32.totalorder %s111, %s125
      %p127 = scmp.eq.s32.totalorder %s24, 0
      %p128 = por %p126, %p127
      %s130 = sadd.s32 %s129, 1
      %p133 = scmp.eq.s32.totalorder %s18, 1
      %p134 = scmp.ne.s32.totalorder %s129, %s131
      %p135 = scmp.eq.s32.totalorder %s18, 0
      %p136 = por %p134, %p135
      %p137 = scmp.ne.s32.totalorder %s129, %s131
      %p138 = scmp.eq.s32.totalorder %s23, 1
      %p139 = por %p137, %p138
      %p140 = scmp.ne.s32.totalorder %s131, %s132
      %p141 = scmp.eq.s32.totalorder %s23, 0
      %p142 = por %p140, %p141
      %p143 = scmp.ne.s32.totalorder %s131, %s132
      %p144 = scmp.eq.s32.totalorder %s24, 1
      %p145 = por %p143, %p144
      %p147 = scmp.ne.s32.totalorder %s132, %s146
      %p148 = scmp.eq.s32.totalorder %s24, 0
      %p149 = por %p147, %p148
      %s150 = ssub.s32 %s25, %s37
      %s151 = ssub.s32 %s26, %s33
      %s152 = sor.u32 %s150, %s151
      %p153 = scmp.eq.s32.totalorder %s152, 0
      %s155 = sadd.s32 %s154, 1
      %s156 = scalar_select %p153, %s154, %s155
      %p159 = pneg %p153
      %p160 = scmp.eq.s32.totalorder %s18, 1
      %p161 = por %p159, %p160
      %p162 = scmp.ne.s32.totalorder %s154, %s157
      %p163 = scmp.eq.s32.totalorder %s18, 0
      %p164 = por %p162, %p163
      %p165 = scmp.ne.s32.totalorder %s154, %s157
      %p166 = scmp.eq.s32.totalorder %s23, 1
      %p167 = por %p165, %p166
      %p168 = scmp.ne.s32.totalorder %s157, %s158
      %p169 = scmp.eq.s32.totalorder %s23, 0
      %p170 = por %p168, %p169
      %p171 = scmp.ne.s32.totalorder %s157, %s158
      %p172 = scmp.eq.s32.totalorder %s24, 1
      %p173 = por %p171, %p172
      %p175 = scmp.ne.s32.totalorder %s158, %s174
      %p176 = scmp.eq.s32.totalorder %s24, 0
      %p177 = por %p175, %p176
      %p178 = scmp.le.s32.totalorder 1, %s18
      %p179 = scmp.lt.s32.totalorder %s18, 3
      %p180 = pnand %p178, %p179
      %p181 = pneg %p180
      // Predicated region
      $region9: #{tpu_custom_call.1} parent=5 // pred_check
        _
      $region10: #{tpu_custom_call.1} parent=5 // pred_check_branch
        %183 = sbr.rel (%p180) target = $region12
      $region11: #{tpu_custom_call.1} parent=5 // pred_region
        %s184 = ssub.s32 %s18, 1
        // Predicated region
        $region13: #{tpu_custom_call.1} parent=11 // pred_check
          %p185 = pneg %p79
        $region14: #{tpu_custom_call.1} parent=11 // pred_check_branch
          %187 = sbr.rel (%p185) target = $region16
        $region15: #{tpu_custom_call.1} parent=11 // pred_region
          _
        $region16: #{tpu_custom_call.1} parent=11 // pred_fallthru
          _
        // Predicated region
        $region17: #{tpu_custom_call.1} parent=11 // pred_check
          %p188 = pneg %p100
        $region18: #{tpu_custom_call.1} parent=11 // pred_check_branch
          %190 = sbr.rel (%p188) target = $region20
        $region19: #{tpu_custom_call.1} parent=11 // pred_region
          _
        $region20: #{tpu_custom_call.1} parent=11 // pred_fallthru
          _
        // Predicated region
        $region21: #{tpu_custom_call.1} parent=11 // pred_check
          %p191 = pneg %p121
        $region22: #{tpu_custom_call.1} parent=11 // pred_check_branch
          %193 = sbr.rel (%p191) target = $region24
        $region23: #{tpu_custom_call.1} parent=11 // pred_region
          %s195 = ssub.s32 3072, 3072
          %196 = vsyncadd [#allocation6], %s195
          %s197 = sshll.u32 [#allocation5], 4
          %s198 = int_to_ptr.vmem [resolvable:$true] %s197
          %203 = dma.hbm_to_vmem [thread:$0]  %s3, 3072, %s198, [#allocation6], 192, 192, 12
        $region24: #{tpu_custom_call.1} parent=11 // pred_fallthru
          _
        // Predicated region
        $region25: #{tpu_custom_call.1} parent=11 // pred_check
          %p204 = pneg %p142
        $region26: #{tpu_custom_call.1} parent=11 // pred_check_branch
          %206 = sbr.rel (%p204) target = $region28
        $region27: #{tpu_custom_call.1} parent=11 // pred_region
          _
        $region28: #{tpu_custom_call.1} parent=11 // pred_fallthru
          _
      $region12: #{tpu_custom_call.1} parent=5 // pred_fallthru
        _
      %p207 = scmp.lt.s32.totalorder %s18, 2
      // Predicated region
      $region29: #{tpu_custom_call.1} parent=5 // pred_check
        %p208 = pneg %p207
      $region30: #{tpu_custom_call.1} parent=5 // pred_check_branch
        %210 = sbr.rel (%p208) target = $region32
      $region31: #{tpu_custom_call.1} parent=5 // pred_region
        // Predicated region
        $region33: #{tpu_custom_call.1} parent=31 // pred_check
          %p211 = pneg %p52
        $region34: #{tpu_custom_call.1} parent=31 // pred_check_branch
          %213 = sbr.rel (%p211) target = $region36
        $region35: #{tpu_custom_call.1} parent=31 // pred_region
          %s214 = sand.u32 %s42, 1
          %s215 = scalar_lea.sflag [#allocation3], %s214
          %s216 = sand.u32 %s42, 1
          %s217 = smul.addr %s216, 256
          %s218 = scalar_lea.vmem [#allocation2], %s217
          %s219 = smul.u32 32, %s26
          %s221 = ssub.s32 4096, 4096
          %222 = vsyncadd %s215, %s221
          %s223 = smul.addr %s25, 32
          %s224 = sadd.s32 %s219, %s223
          %s225 = smul.addr %s224, 128
          %s226 = scalar_lea.hbm %s0, %s225
          %s227 = sshll.u32 %s218, 4
          %s228 = int_to_ptr.vmem [resolvable:$true] %s227
          %233 = dma.hbm_to_vmem [thread:$0]  %s226, 4096, %s228, %s215, 128, 128, 8
        $region36: #{tpu_custom_call.1} parent=31 // pred_fallthru
          _
      $region32: #{tpu_custom_call.1} parent=5 // pred_fallthru
        _
      %p234 = scmp.le.s32.totalorder 1, %s18
      %p235 = scmp.lt.s32.totalorder %s18, 3
      %p236 = pnand %p234, %p235
      %p237 = pneg %p236
      // Predicated region
      $region37: #{tpu_custom_call.1} parent=5 // pred_check
        _
      $region38: #{tpu_custom_call.1} parent=5 // pred_check_branch
        %239 = sbr.rel (%p236) target = $region40
      $region39: #{tpu_custom_call.1} parent=5 // pred_region
        %s240 = ssub.s32 %s18, 1
        %s241 = sand.u32 %s45, 1
        %s242 = scalar_lea.sflag [#allocation3], %s241
        %s243 = sand.u32 %s45, 1
        %s244 = smul.addr %s243, 256
        %s245 = scalar_lea.vmem [#allocation2], %s244
        // Predicated region
        $region41: #{tpu_custom_call.1} parent=39 // pred_check
          %p246 = pneg %p58
        $region42: #{tpu_custom_call.1} parent=39 // pred_check_branch
          %248 = sbr.rel (%p246) target = $region44
        $region43: #{tpu_custom_call.1} parent=39 // pred_region
          %249 = dma.done %s242, 4096
        $region44: #{tpu_custom_call.1} parent=39 // pred_fallthru
          _
        // Predicated region
        $region45: #{tpu_custom_call.1} parent=39 // pred_check
          %p250 = pneg %p121
        $region46: #{tpu_custom_call.1} parent=39 // pred_check_branch
          %252 = sbr.rel (%p250) target = $region48
        $region47: #{tpu_custom_call.1} parent=39 // pred_region
          %253 = dma.done [#allocation6], 3072
        $region48: #{tpu_custom_call.1} parent=39 // pred_fallthru
          _
        %s254 = sand.u32 %s45, 1
        %s255 = scalar_lea.sflag [#allocation3], %s254
        %s256 = sand.u32 %s45, 1
        %s257 = smul.addr %s256, 256
        %s258 = scalar_lea.vmem [#allocation2], %s257
        %p259 = pneg %p58
        %p260 = pneg %p55
        %p261 = pneg %p79
        %p262 = pneg %p76
        %p263 = pneg %p100
        %p264 = pneg %p97
        %p265 = pneg %p121
        %p266 = pneg %p118
        %p267 = pneg %p142
        %p268 = pneg %p139
        %p269 = pneg %p170
        %p270 = pneg %p167
        %s271 = sand.u32 %s157, 1
        %s272 = scalar_lea.sflag [#allocation4], %s271
        %s273 = sand.u32 %s157, 1
        %s274 = smul.addr %s273, 384
        %s275 = scalar_lea.vmem [#allocation7], %s274
        %s276 = smul.u32 32, %s28
        %s277 = smul.u32 32, %s28
        %v279 = vld [vmem:[%s245] sm:$0xff]
        %v280 = vld [vmem:[%s245 + $0x8] sm:$0xff]
        %v281 = vld [vmem:[%s245 + $0x10] sm:$0xff]
        %v282 = vld [vmem:[%s245 + $0x18] sm:$0xff]
        %v283 = vld [vmem:[%s245 + $0x20] sm:$0xff]
        %v284 = vld [vmem:[%s245 + $0x28] sm:$0xff]
        %v285 = vld [vmem:[%s245 + $0x30] sm:$0xff]
        %v286 = vld [vmem:[%s245 + $0x38] sm:$0xff]
        %v287 = vld [vmem:[%s245 + $0x40] sm:$0xff]
        %v288 = vld [vmem:[%s245 + $0x48] sm:$0xff]
        %v289 = vld [vmem:[%s245 + $0x50] sm:$0xff]
        %v290 = vld [vmem:[%s245 + $0x58] sm:$0xff]
        %v291 = vld [vmem:[%s245 + $0x60] sm:$0xff]
        %v292 = vld [vmem:[%s245 + $0x68] sm:$0xff]
        %v293 = vld [vmem:[%s245 + $0x70] sm:$0xff]
        %v294 = vld [vmem:[%s245 + $0x78] sm:$0xff]
        %v295 = vld [vmem:[%s245 + $0x80] sm:$0xff]
        %v296 = vld [vmem:[%s245 + $0x88] sm:$0xff]
        %v297 = vld [vmem:[%s245 + $0x90] sm:$0xff]
        %v298 = vld [vmem:[%s245 + $0x98] sm:$0xff]
        %v299 = vld [vmem:[%s245 + $0xa0] sm:$0xff]
        %v300 = vld [vmem:[%s245 + $0xa8] sm:$0xff]
        %v301 = vld [vmem:[%s245 + $0xb0] sm:$0xff]
        %v302 = vld [vmem:[%s245 + $0xb8] sm:$0xff]
        %v303 = vld [vmem:[%s245 + $0xc0] sm:$0xff]
        %v304 = vld [vmem:[%s245 + $0xc8] sm:$0xff]
        %v305 = vld [vmem:[%s245 + $0xd0] sm:$0xff]
        %v306 = vld [vmem:[%s245 + $0xd8] sm:$0xff]
        %v307 = vld [vmem:[%s245 + $0xe0] sm:$0xff]
        %v308 = vld [vmem:[%s245 + $0xe8] sm:$0xff]
        %v309 = vld [vmem:[%s245 + $0xf0] sm:$0xff]
        %v310 = vld [vmem:[%s245 + $0xf8] sm:$0xff]
        %311 = vadd.xlane.f32.xlu0 %v279
        %v312 = vpop.xlane.xlu0 %311
        %313 = vadd.xlane.f32.xlu0 %v280
        %v314 = vpop.xlane.xlu0 %313
        %315 = vadd.xlane.f32.xlu0 %v281
        %v316 = vpop.xlane.xlu0 %315
        %317 = vadd.xlane.f32.xlu0 %v282
        %v318 = vpop.xlane.xlu0 %317
        %319 = vadd.xlane.f32.xlu0 %v283
        %v320 = vpop.xlane.xlu0 %319
        %321 = vadd.xlane.f32.xlu0 %v284
        %v322 = vpop.xlane.xlu0 %321
        %323 = vadd.xlane.f32.xlu0 %v285
        %v324 = vpop.xlane.xlu0 %323
        %325 = vadd.xlane.f32.xlu0 %v286
        %v326 = vpop.xlane.xlu0 %325
        %327 = vadd.xlane.f32.xlu0 %v287
        %v328 = vpop.xlane.xlu0 %327
        %329 = vadd.xlane.f32.xlu0 %v288
        %v330 = vpop.xlane.xlu0 %329
        %331 = vadd.xlane.f32.xlu0 %v289
        %v332 = vpop.xlane.xlu0 %331
        %333 = vadd.xlane.f32.xlu0 %v290
        %v334 = vpop.xlane.xlu0 %333
        %335 = vadd.xlane.f32.xlu0 %v291
        %v336 = vpop.xlane.xlu0 %335
        %337 = vadd.xlane.f32.xlu0 %v292
        %v338 = vpop.xlane.xlu0 %337
        %339 = vadd.xlane.f32.xlu0 %v293
        %v340 = vpop.xlane.xlu0 %339
        %341 = vadd.xlane.f32.xlu0 %v294
        %v342 = vpop.xlane.xlu0 %341
        %343 = vadd.xlane.f32.xlu0 %v295
        %v344 = vpop.xlane.xlu0 %343
        %345 = vadd.xlane.f32.xlu0 %v296
        %v346 = vpop.xlane.xlu0 %345
        %347 = vadd.xlane.f32.xlu0 %v297
        %v348 = vpop.xlane.xlu0 %347
        %349 = vadd.xlane.f32.xlu0 %v298
        %v350 = vpop.xlane.xlu0 %349
        %351 = vadd.xlane.f32.xlu0 %v299
        %v352 = vpop.xlane.xlu0 %351
        %353 = vadd.xlane.f32.xlu0 %v300
        %v354 = vpop.xlane.xlu0 %353
        %355 = vadd.xlane.f32.xlu0 %v301
        %v356 = vpop.xlane.xlu0 %355
        %357 = vadd.xlane.f32.xlu0 %v302
        %v358 = vpop.xlane.xlu0 %357
        %359 = vadd.xlane.f32.xlu0 %v303
        %v360 = vpop.xlane.xlu0 %359
        %361 = vadd.xlane.f32.xlu0 %v304
        %v362 = vpop.xlane.xlu0 %361
        %363 = vadd.xlane.f32.xlu0 %v305
        %v364 = vpop.xlane.xlu0 %363
        %365 = vadd.xlane.f32.xlu0 %v306
        %v366 = vpop.xlane.xlu0 %365
        %367 = vadd.xlane.f32.xlu0 %v307
        %v368 = vpop.xlane.xlu0 %367
        %369 = vadd.xlane.f32.xlu0 %v308
        %v370 = vpop.xlane.xlu0 %369
        %371 = vadd.xlane.f32.xlu0 %v309
        %v372 = vpop.xlane.xlu0 %371
        %373 = vadd.xlane.f32.xlu0 %v310
        %v374 = vpop.xlane.xlu0 %373
        %v375 = vrcp.pop 128.0
        %v376 = vmul.f32 %v312, %v375
        %v377 = vmul.f32 %v314, %v375
        %v378 = vmul.f32 %v316, %v375
        %v379 = vmul.f32 %v318, %v375
        %v380 = vmul.f32 %v320, %v375
        %v381 = vmul.f32 %v322, %v375
        %v382 = vmul.f32 %v324, %v375
        %v383 = vmul.f32 %v326, %v375
        %v384 = vmul.f32 %v328, %v375
        %v385 = vmul.f32 %v330, %v375
        %v386 = vmul.f32 %v332, %v375
        %v387 = vmul.f32 %v334, %v375
        %v388 = vmul.f32 %v336, %v375
        %v389 = vmul.f32 %v338, %v375
        %v390 = vmul.f32 %v340, %v375
        %v391 = vmul.f32 %v342, %v375
        %v392 = vmul.f32 %v344, %v375
        %v393 = vmul.f32 %v346, %v375
        %v394 = vmul.f32 %v348, %v375
        %v395 = vmul.f32 %v350, %v375
        %v396 = vmul.f32 %v352, %v375
        %v397 = vmul.f32 %v354, %v375
        %v398 = vmul.f32 %v356, %v375
        %v399 = vmul.f32 %v358, %v375
        %v400 = vmul.f32 %v360, %v375
        %v401 = vmul.f32 %v362, %v375
        %v402 = vmul.f32 %v364, %v375
        %v403 = vmul.f32 %v366, %v375
        %v404 = vmul.f32 %v368, %v375
        %v405 = vmul.f32 %v370, %v375
        %v406 = vmul.f32 %v372, %v375
        %v407 = vmul.f32 %v374, %v375
        %v408 = vsub.f32 %v279, %v376
        %v409 = vsub.f32 %v280, %v377
        %v410 = vsub.f32 %v281, %v378
        %v411 = vsub.f32 %v282, %v379
        %v412 = vsub.f32 %v283, %v380
        %v413 = vsub.f32 %v284, %v381
        %v414 = vsub.f32 %v285, %v382
        %v415 = vsub.f32 %v286, %v383
        %v416 = vsub.f32 %v287, %v384
        %v417 = vsub.f32 %v288, %v385
        %v418 = vsub.f32 %v289, %v386
        %v419 = vsub.f32 %v290, %v387
        %v420 = vsub.f32 %v291, %v388
        %v421 = vsub.f32 %v292, %v389
        %v422 = vsub.f32 %v293, %v390
        %v423 = vsub.f32 %v294, %v391
        %v424 = vsub.f32 %v295, %v392
        %v425 = vsub.f32 %v296, %v393
        %v426 = vsub.f32 %v297, %v394
        %v427 = vsub.f32 %v298, %v395
        %v428 = vsub.f32 %v299, %v396
        %v429 = vsub.f32 %v300, %v397
        %v430 = vsub.f32 %v301, %v398
        %v431 = vsub.f32 %v302, %v399
        %v432 = vsub.f32 %v303, %v400
        %v433 = vsub.f32 %v304, %v401
        %v434 = vsub.f32 %v305, %v402
        %v435 = vsub.f32 %v306, %v403
        %v436 = vsub.f32 %v307, %v404
        %v437 = vsub.f32 %v308, %v405
        %v438 = vsub.f32 %v309, %v406
        %v439 = vsub.f32 %v310, %v407
        %v440 = vmul.f32 %v408, %v408
        %v441 = vmul.f32 %v409, %v409
        %v442 = vmul.f32 %v410, %v410
        %v443 = vmul.f32 %v411, %v411
        %v444 = vmul.f32 %v412, %v412
        %v445 = vmul.f32 %v413, %v413
        %v446 = vmul.f32 %v414, %v414
        %v447 = vmul.f32 %v415, %v415
        %v448 = vmul.f32 %v416, %v416
        %v449 = vmul.f32 %v417, %v417
        %v450 = vmul.f32 %v418, %v418
        %v451 = vmul.f32 %v419, %v419
        %v452 = vmul.f32 %v420, %v420
        %v453 = vmul.f32 %v421, %v421
        %v454 = vmul.f32 %v422, %v422
        %v455 = vmul.f32 %v423, %v423
        %v456 = vmul.f32 %v424, %v424
        %v457 = vmul.f32 %v425, %v425
        %v458 = vmul.f32 %v426, %v426
        %v459 = vmul.f32 %v427, %v427
        %v460 = vmul.f32 %v428, %v428
        %v461 = vmul.f32 %v429, %v429
        %v462 = vmul.f32 %v430, %v430
        %v463 = vmul.f32 %v431, %v431
        %v464 = vmul.f32 %v432, %v432
        %v465 = vmul.f32 %v433, %v433
        %v466 = vmul.f32 %v434, %v434
        %v467 = vmul.f32 %v435, %v435
        %v468 = vmul.f32 %v436, %v436
        %v469 = vmul.f32 %v437, %v437
        %v470 = vmul.f32 %v438, %v438
        %v471 = vmul.f32 %v439, %v439
        %472 = vadd.xlane.f32.xlu0 %v440
        %v473 = vpop.xlane.xlu0 %472
        %474 = vadd.xlane.f32.xlu0 %v441
        %v475 = vpop.xlane.xlu0 %474
        %476 = vadd.xlane.f32.xlu0 %v442
        %v477 = vpop.xlane.xlu0 %476
        %478 = vadd.xlane.f32.xlu0 %v443
        %v479 = vpop.xlane.xlu0 %478
        %480 = vadd.xlane.f32.xlu0 %v444
        %v481 = vpop.xlane.xlu0 %480
        %482 = vadd.xlane.f32.xlu0 %v445
        %v483 = vpop.xlane.xlu0 %482
        %484 = vadd.xlane.f32.xlu0 %v446
        %v485 = vpop.xlane.xlu0 %484
        %486 = vadd.xlane.f32.xlu0 %v447
        %v487 = vpop.xlane.xlu0 %486
        %488 = vadd.xlane.f32.xlu0 %v448
        %v489 = vpop.xlane.xlu0 %488
        %490 = vadd.xlane.f32.xlu0 %v449
        %v491 = vpop.xlane.xlu0 %490
        %492 = vadd.xlane.f32.xlu0 %v450
        %v493 = vpop.xlane.xlu0 %492
        %494 = vadd.xlane.f32.xlu0 %v451
        %v495 = vpop.xlane.xlu0 %494
        %496 = vadd.xlane.f32.xlu0 %v452
        %v497 = vpop.xlane.xlu0 %496
        %498 = vadd.xlane.f32.xlu0 %v453
        %v499 = vpop.xlane.xlu0 %498
        %500 = vadd.xlane.f32.xlu0 %v454
        %v501 = vpop.xlane.xlu0 %500
        %502 = vadd.xlane.f32.xlu0 %v455
        %v503 = vpop.xlane.xlu0 %502
        %504 = vadd.xlane.f32.xlu0 %v456
        %v505 = vpop.xlane.xlu0 %504
        %506 = vadd.xlane.f32.xlu0 %v457
        %v507 = vpop.xlane.xlu0 %506
        %508 = vadd.xlane.f32.xlu0 %v458
        %v509 = vpop.xlane.xlu0 %508
        %510 = vadd.xlane.f32.xlu0 %v459
        %v511 = vpop.xlane.xlu0 %510
        %512 = vadd.xlane.f32.xlu0 %v460
        %v513 = vpop.xlane.xlu0 %512
        %514 = vadd.xlane.f32.xlu0 %v461
        %v515 = vpop.xlane.xlu0 %514
        %516 = vadd.xlane.f32.xlu0 %v462
        %v517 = vpop.xlane.xlu0 %516
        %518 = vadd.xlane.f32.xlu0 %v463
        %v519 = vpop.xlane.xlu0 %518
        %520 = vadd.xlane.f32.xlu0 %v464
        %v521 = vpop.xlane.xlu0 %520
        %522 = vadd.xlane.f32.xlu0 %v465
        %v523 = vpop.xlane.xlu0 %522
        %524 = vadd.xlane.f32.xlu0 %v466
        %v525 = vpop.xlane.xlu0 %524
        %526 = vadd.xlane.f32.xlu0 %v467
        %v527 = vpop.xlane.xlu0 %526
        %528 = vadd.xlane.f32.xlu0 %v468
        %v529 = vpop.xlane.xlu0 %528
        %530 = vadd.xlane.f32.xlu0 %v469
        %v531 = vpop.xlane.xlu0 %530
        %532 = vadd.xlane.f32.xlu0 %v470
        %v533 = vpop.xlane.xlu0 %532
        %534 = vadd.xlane.f32.xlu0 %v471
        %v535 = vpop.xlane.xlu0 %534
        %v536 = vmul.f32 %v473, %v375
        %v537 = vmul.f32 %v475, %v375
        %v538 = vmul.f32 %v477, %v375
        %v539 = vmul.f32 %v479, %v375
        %v540 = vmul.f32 %v481, %v375
        %v541 = vmul.f32 %v483, %v375
        %v542 = vmul.f32 %v485, %v375
        %v543 = vmul.f32 %v487, %v375
        %v544 = vmul.f32 %v489, %v375
        %v545 = vmul.f32 %v491, %v375
        %v546 = vmul.f32 %v493, %v375
        %v547 = vmul.f32 %v495, %v375
        %v548 = vmul.f32 %v497, %v375
        %v549 = vmul.f32 %v499, %v375
        %v550 = vmul.f32 %v501, %v375
        %v551 = vmul.f32 %v503, %v375
        %v552 = vmul.f32 %v505, %v375
        %v553 = vmul.f32 %v507, %v375
        %v554 = vmul.f32 %v509, %v375
        %v555 = vmul.f32 %v511, %v375
        %v556 = vmul.f32 %v513, %v375
        %v557 = vmul.f32 %v515, %v375
        %v558 = vmul.f32 %v517, %v375
        %v559 = vmul.f32 %v519, %v375
        %v560 = vmul.f32 %v521, %v375
        %v561 = vmul.f32 %v523, %v375
        %v562 = vmul.f32 %v525, %v375
        %v563 = vmul.f32 %v527, %v375
        %v564 = vmul.f32 %v529, %v375
        %v565 = vmul.f32 %v531, %v375
        %v566 = vmul.f32 %v533, %v375
        %v567 = vmul.f32 %v535, %v375
        %v568 = vadd.f32 %v536, 1e-05
        %v569 = vadd.f32 %v537, 1e-05
        %v570 = vadd.f32 %v538, 1e-05
        %v571 = vadd.f32 %v539, 1e-05
        %v572 = vadd.f32 %v540, 1e-05
        %v573 = vadd.f32 %v541, 1e-05
        %v574 = vadd.f32 %v542, 1e-05
        %v575 = vadd.f32 %v543, 1e-05
        %v576 = vadd.f32 %v544, 1e-05
        %v577 = vadd.f32 %v545, 1e-05
        %v578 = vadd.f32 %v546, 1e-05
        %v579 = vadd.f32 %v547, 1e-05
        %v580 = vadd.f32 %v548, 1e-05
        %v581 = vadd.f32 %v549, 1e-05
        %v582 = vadd.f32 %v550, 1e-05
        %v583 = vadd.f32 %v551, 1e-05
        %v584 = vadd.f32 %v552, 1e-05
        %v585 = vadd.f32 %v553, 1e-05
        %v586 = vadd.f32 %v554, 1e-05
        %v587 = vadd.f32 %v555, 1e-05
        %v588 = vadd.f32 %v556, 1e-05
        %v589 = vadd.f32 %v557, 1e-05
        %v590 = vadd.f32 %v558, 1e-05
        %v591 = vadd.f32 %v559, 1e-05
        %v592 = vadd.f32 %v560, 1e-05
        %v593 = vadd.f32 %v561, 1e-05
        %v594 = vadd.f32 %v562, 1e-05
        %v595 = vadd.f32 %v563, 1e-05
        %v596 = vadd.f32 %v564, 1e-05
        %v597 = vadd.f32 %v565, 1e-05
        %v598 = vadd.f32 %v566, 1e-05
        %v599 = vadd.f32 %v567, 1e-05
        %v600 = vrsqrt.pop %v568
        %v601 = vrsqrt.pop %v569
        %v602 = vrsqrt.pop %v570
        %v603 = vrsqrt.pop %v571
        %v604 = vrsqrt.pop %v572
        %v605 = vrsqrt.pop %v573
        %v606 = vrsqrt.pop %v574
        %v607 = vrsqrt.pop %v575
        %v608 = vrsqrt.pop %v576
        %v609 = vrsqrt.pop %v577
        %v610 = vrsqrt.pop %v578
        %v611 = vrsqrt.pop %v579
        %v612 = vrsqrt.pop %v580
        %v613 = vrsqrt.pop %v581
        %v614 = vrsqrt.pop %v582
        %v615 = vrsqrt.pop %v583
        %v616 = vrsqrt.pop %v584
        %v617 = vrsqrt.pop %v585
        %v618 = vrsqrt.pop %v586
        %v619 = vrsqrt.pop %v587
        %v620 = vrsqrt.pop %v588
        %v621 = vrsqrt.pop %v589
        %v622 = vrsqrt.pop %v590
        %v623 = vrsqrt.pop %v591
        %v624 = vrsqrt.pop %v592
        %v625 = vrsqrt.pop %v593
        %v626 = vrsqrt.pop %v594
        %v627 = vrsqrt.pop %v595
        %v628 = vrsqrt.pop %v596
        %v629 = vrsqrt.pop %v597
        %v630 = vrsqrt.pop %v598
        %v631 = vrsqrt.pop %v599
        %v632 = vmul.f32 %v408, %v600
        %v633 = vmul.f32 %v409, %v601
        %v634 = vmul.f32 %v410, %v602
        %v635 = vmul.f32 %v411, %v603
        %v636 = vmul.f32 %v412, %v604
        %v637 = vmul.f32 %v413, %v605
        %v638 = vmul.f32 %v414, %v606
        %v639 = vmul.f32 %v415, %v607
        %v640 = vmul.f32 %v416, %v608
        %v641 = vmul.f32 %v417, %v609
        %v642 = vmul.f32 %v418, %v610
        %v643 = vmul.f32 %v419, %v611
        %v644 = vmul.f32 %v420, %v612
        %v645 = vmul.f32 %v421, %v613
        %v646 = vmul.f32 %v422, %v614
        %v647 = vmul.f32 %v423, %v615
        %v648 = vmul.f32 %v424, %v616
        %v649 = vmul.f32 %v425, %v617
        %v650 = vmul.f32 %v426, %v618
        %v651 = vmul.f32 %v427, %v619
        %v652 = vmul.f32 %v428, %v620
        %v653 = vmul.f32 %v429, %v621
        %v654 = vmul.f32 %v430, %v622
        %v655 = vmul.f32 %v431, %v623
        %v656 = vmul.f32 %v432, %v624
        %v657 = vmul.f32 %v433, %v625
        %v658 = vmul.f32 %v434, %v626
        %v659 = vmul.f32 %v435, %v627
        %v660 = vmul.f32 %v436, %v628
        %v661 = vmul.f32 %v437, %v629
        %v662 = vmul.f32 %v438, %v630
        %v663 = vmul.f32 %v439, %v631
        %v664 = vld [vmem:[%s1] sm:$0x1]
        %v666 = vlaneseq
        %v667 = vshrl.u32 %v666, 7
        %v668 = vsub.s32 0, %v667
        %v669 = vrot.slane %v664, %v668
        %v671 = vmul.f32 %v632, %v669
        %v672 = vmul.f32 %v633, %v669
        %v673 = vmul.f32 %v634, %v669
        %v674 = vmul.f32 %v635, %v669
        %v675 = vmul.f32 %v636, %v669
        %v676 = vmul.f32 %v637, %v669
        %v677 = vmul.f32 %v638, %v669
        %v678 = vmul.f32 %v639, %v669
        %v679 = vmul.f32 %v640, %v669
        %v680 = vmul.f32 %v641, %v669
        %v681 = vmul.f32 %v642, %v669
        %v682 = vmul.f32 %v643, %v669
        %v683 = vmul.f32 %v644, %v669
        %v684 = vmul.f32 %v645, %v669
        %v685 = vmul.f32 %v646, %v669
        %v686 = vmul.f32 %v647, %v669
        %v687 = vmul.f32 %v648, %v669
        %v688 = vmul.f32 %v649, %v669
        %v689 = vmul.f32 %v650, %v669
        %v690 = vmul.f32 %v651, %v669
        %v691 = vmul.f32 %v652, %v669
        %v692 = vmul.f32 %v653, %v669
        %v693 = vmul.f32 %v654, %v669
        %v694 = vmul.f32 %v655, %v669
        %v695 = vmul.f32 %v656, %v669
        %v696 = vmul.f32 %v657, %v669
        %v697 = vmul.f32 %v658, %v669
        %v698 = vmul.f32 %v659, %v669
        %v699 = vmul.f32 %v660, %v669
        %v700 = vmul.f32 %v661, %v669
        %v701 = vmul.f32 %v662, %v669
        %v702 = vmul.f32 %v663, %v669
        %v703 = vld [vmem:[%s2] sm:$0x1]
        %v705 = vlaneseq
        %v706 = vshrl.u32 %v705, 7
        %v707 = vsub.s32 0, %v706
        %v708 = vrot.slane %v703, %v707
        %v710 = vadd.f32 %v671, %v708
        %v711 = vadd.f32 %v672, %v708
        %v712 = vadd.f32 %v673, %v708
        %v713 = vadd.f32 %v674, %v708
        %v714 = vadd.f32 %v675, %v708
        %v715 = vadd.f32 %v676, %v708
        %v716 = vadd.f32 %v677, %v708
        %v717 = vadd.f32 %v678, %v708
        %v718 = vadd.f32 %v679, %v708
        %v719 = vadd.f32 %v680, %v708
        %v720 = vadd.f32 %v681, %v708
        %v721 = vadd.f32 %v682, %v708
        %v722 = vadd.f32 %v683, %v708
        %v723 = vadd.f32 %v684, %v708
        %v724 = vadd.f32 %v685, %v708
        %v725 = vadd.f32 %v686, %v708
        %v726 = vadd.f32 %v687, %v708
        %v727 = vadd.f32 %v688, %v708
        %v728 = vadd.f32 %v689, %v708
        %v729 = vadd.f32 %v690, %v708
        %v730 = vadd.f32 %v691, %v708
        %v731 = vadd.f32 %v692, %v708
        %v732 = vadd.f32 %v693, %v708
        %v733 = vadd.f32 %v694, %v708
        %v734 = vadd.f32 %v695, %v708
        %v735 = vadd.f32 %v696, %v708
        %v736 = vadd.f32 %v697, %v708
        %v737 = vadd.f32 %v698, %v708
        %v738 = vadd.f32 %v699, %v708
        %v739 = vadd.f32 %v700, %v708
        %v740 = vadd.f32 %v701, %v708
        %v741 = vadd.f32 %v702, %v708
        %v742 = vpack.c.bf16 %v711, %v710
        %v743 = vpack.c.bf16 %v713, %v712
        %v744 = vpack.c.bf16 %v715, %v714
        %v745 = vpack.c.bf16 %v717, %v716
        %v746 = vpack.c.bf16 %v719, %v718
        %v747 = vpack.c.bf16 %v721, %v720
        %v748 = vpack.c.bf16 %v723, %v722
        %v749 = vpack.c.bf16 %v725, %v724
        %v750 = vpack.c.bf16 %v727, %v726
        %v751 = vpack.c.bf16 %v729, %v728
        %v752 = vpack.c.bf16 %v731, %v730
        %v753 = vpack.c.bf16 %v733, %v732
        %v754 = vpack.c.bf16 %v735, %v734
        %v755 = vpack.c.bf16 %v737, %v736
        %v756 = vpack.c.bf16 %v739, %v738
        %v757 = vpack.c.bf16 %v741, %v740
        %v758 = vld [vmem:[#allocation5] sm:$0xff]
        %v759 = vld [vmem:[#allocation5 + $0x8] sm:$0xf]
        %v760 = vld [vmem:[#allocation5 + $0xc] sm:$0xff]
        %v761 = vld [vmem:[#allocation5 + $0x14] sm:$0xf]
        %v762 = vld [vmem:[#allocation5 + $0x18] sm:$0xff]
        %v763 = vld [vmem:[#allocation5 + $0x20] sm:$0xf]
        %v764 = vld [vmem:[#allocation5 + $0x24] sm:$0xff]
        %v765 = vld [vmem:[#allocation5 + $0x2c] sm:$0xf]
        %v766 = vld [vmem:[#allocation5 + $0x30] sm:$0xff]
        %v767 = vld [vmem:[#allocation5 + $0x38] sm:$0xf]
        %v768 = vld [vmem:[#allocation5 + $0x3c] sm:$0xff]
        %v769 = vld [vmem:[#allocation5 + $0x44] sm:$0xf]
        %v770 = vld [vmem:[#allocation5 + $0x48] sm:$0xff]
        %v771 = vld [vmem:[#allocation5 + $0x50] sm:$0xf]
        %v772 = vld [vmem:[#allocation5 + $0x54] sm:$0xff]
        %v773 = vld [vmem:[#allocation5 + $0x5c] sm:$0xf]
        %v774 = vld [vmem:[#allocation5 + $0x60] sm:$0xff]
        %v775 = vld [vmem:[#allocation5 + $0x68] sm:$0xf]
        %v776 = vld [vmem:[#allocation5 + $0x6c] sm:$0xff]
        %v777 = vld [vmem:[#allocation5 + $0x74] sm:$0xf]
        %v778 = vld [vmem:[#allocation5 + $0x78] sm:$0xff]
        %v779 = vld [vmem:[#allocation5 + $0x80] sm:$0xf]
        %v780 = vld [vmem:[#allocation5 + $0x84] sm:$0xff]
        %v781 = vld [vmem:[#allocation5 + $0x8c] sm:$0xf]
        %v782 = vld [vmem:[#allocation5 + $0x90] sm:$0xff]
        %v783 = vld [vmem:[#allocation5 + $0x98] sm:$0xf]
        %v784 = vld [vmem:[#allocation5 + $0x9c] sm:$0xff]
        %v785 = vld [vmem:[#allocation5 + $0xa4] sm:$0xf]
        %v786 = vld [vmem:[#allocation5 + $0xa8] sm:$0xff]
        %v787 = vld [vmem:[#allocation5 + $0xb0] sm:$0xf]
        %v788 = vld [vmem:[#allocation5 + $0xb4] sm:$0xff]
        %v789 = vld [vmem:[#allocation5 + $0xbc] sm:$0xf]
        %v790 = vld [vmem:[%s4] sm:$0x7]
        %v792 = vlaneseq
        %v793 = vshrl.u32 %v792, 7
        %v794 = vsub.s32 0, %v793
        %v795 = vrot.slane %v790, %v794
        %v796 = vlaneseq
        %v797 = vshrl.u32 %v796, 7
        %v798 = vsub.s32 1, %v797
        %v799 = vrot.slane %v790, %v798
        %v800 = vlaneseq
        %v801 = vshrl.u32 %v800, 7
        %v802 = vsub.s32 2, %v801
        %v803 = vrot.slane %v790, %v802
        %v839 = vunpack.c.l.b16 %v758
        %v840 = vunpack.c.h.b16 %v758
        %v841 = vunpack.c.l.b16 %v759
        %v842 = vunpack.c.l.b16 %v760
        %v843 = vunpack.c.h.b16 %v760
        %v844 = vunpack.c.l.b16 %v761
        %v845 = vunpack.c.l.b16 %v762
        %v846 = vunpack.c.h.b16 %v762
        %v847 = vunpack.c.l.b16 %v763
        %v848 = vunpack.c.l.b16 %v764
        %v849 = vunpack.c.h.b16 %v764
        %v850 = vunpack.c.l.b16 %v765
        %v851 = vunpack.c.l.b16 %v766
        %v852 = vunpack.c.h.b16 %v766
        %v853 = vunpack.c.l.b16 %v767
        %v854 = vunpack.c.l.b16 %v768
        %v855 = vunpack.c.h.b16 %v768
        %v856 = vunpack.c.l.b16 %v769
        %v857 = vunpack.c.l.b16 %v770
        %v858 = vunpack.c.h.b16 %v770
        %v859 = vunpack.c.l.b16 %v771
        %v860 = vunpack.c.l.b16 %v772
        %v861 = vunpack.c.h.b16 %v772
        %v862 = vunpack.c.l.b16 %v773
        %v863 = vunpack.c.l.b16 %v774
        %v864 = vunpack.c.h.b16 %v774
        %v865 = vunpack.c.l.b16 %v775
        %v866 = vunpack.c.l.b16 %v776
        %v867 = vunpack.c.h.b16 %v776
        %v868 = vunpack.c.l.b16 %v777
        %v869 = vunpack.c.l.b16 %v778
        %v870 = vunpack.c.h.b16 %v778
        %v871 = vunpack.c.l.b16 %v779
        %v872 = vunpack.c.l.b16 %v780
        %v873 = vunpack.c.h.b16 %v780
        %v874 = vunpack.c.l.b16 %v781
        %v875 = vunpack.c.l.b16 %v782
        %v876 = vunpack.c.h.b16 %v782
        %v877 = vunpack.c.l.b16 %v783
        %v878 = vunpack.c.l.b16 %v784
        %v879 = vunpack.c.h.b16 %v784
        %v880 = vunpack.c.l.b16 %v785
        %v881 = vunpack.c.l.b16 %v786
        %v882 = vunpack.c.h.b16 %v786
        %v883 = vunpack.c.l.b16 %v787
        %v884 = vunpack.c.l.b16 %v788
        %v885 = vunpack.c.h.b16 %v788
        %v886 = vunpack.c.l.b16 %v789
        %v887 = vpack.c.b16 %v842, %v839
        %v888 = vpack.c.b16 %v843, %v840
        %v889 = vpack.c.b16 %v844, %v841
        %v890 = vpack.c.b16 %v848, %v845
        %v891 = vpack.c.b16 %v849, %v846
        %v892 = vpack.c.b16 %v850, %v847
        %v893 = vpack.c.b16 %v854, %v851
        %v894 = vpack.c.b16 %v855, %v852
        %v895 = vpack.c.b16 %v856, %v853
        %v896 = vpack.c.b16 %v860, %v857
        %v897 = vpack.c.b16 %v861, %v858
        %v898 = vpack.c.b16 %v862, %v859
        %v899 = vpack.c.b16 %v866, %v863
        %v900 = vpack.c.b16 %v867, %v864
        %v901 = vpack.c.b16 %v868, %v865
        %v902 = vpack.c.b16 %v872, %v869
        %v903 = vpack.c.b16 %v873, %v870
        %v904 = vpack.c.b16 %v874, %v871
        %v905 = vpack.c.b16 %v878, %v875
        %v906 = vpack.c.b16 %v879, %v876
        %v907 = vpack.c.b16 %v880, %v877
        %v908 = vpack.c.b16 %v884, %v881
        %v909 = vpack.c.b16 %v885, %v882
        %v910 = vpack.c.b16 %v886, %v883
        %935 = vmatprep.subr.bf16.mxu0 %v888
        %936 = vmatpush1.bf16.msra.mxu0 %v887
        %937 = vmatprep.subr.bf16.mxu0 %v891
        %938 = vmatpush1.bf16.msra.mxu0 %v890
        %939 = vmatprep.subr.bf16.mxu0 %v894
        %940 = vmatpush1.bf16.msra.mxu0 %v893
        %941 = vmatprep.subr.bf16.mxu0 %v897
        %942 = vmatpush1.bf16.msra.mxu0 %v896
        %943 = vmatprep.subr.bf16.mxu0 %v900
        %944 = vmatpush1.bf16.msra.mxu0 %v899
        %945 = vmatprep.subr.bf16.mxu0 %v903
        %946 = vmatpush1.bf16.msra.mxu0 %v902
        %947 = vmatprep.subr.bf16.mxu0 %v906
        %948 = vmatpush1.bf16.msra.mxu0 %v905
        %949 = vmatprep.subr.bf16.mxu0 %v909
        %950 = vmatpush1.bf16.msra.mxu0 %v908
        %951 = vmatprep.subr.bf16.mxu0 0
        %952 = vmatpush1.bf16.msra.mxu0 0
        %953 = vmatprep.subr.bf16.mxu0 0
        %954 = vmatpush1.bf16.msra.mxu0 0
        %955 = vmatprep.subr.bf16.mxu0 0
        %956 = vmatpush1.bf16.msra.mxu0 0
        %957 = vmatprep.subr.bf16.mxu0 0
        %958 = vmatpush1.bf16.msra.mxu0 0
        %959 = vmatprep.subr.bf16.mxu0 0
        %960 = vmatpush1.bf16.msra.mxu0 0
        %961 = vmatprep.subr.bf16.mxu0 0
        %962 = vmatpush1.bf16.msra.mxu0 0
        %963 = vmatprep.subr.bf16.mxu0 0
        %964 = vmatpush1.bf16.msra.mxu0 0
        %965 = vmatprep.subr.bf16.mxu0 0
        %966 = vmatpush1.bf16.msra.mxu0 0
        %967 = vmatprep.mubr.bf16.mxu0 0
        %968 = vmatmul.mubr.bf16.gmra.mrb[0].mxu0 %v742
        %v969 = vpop.f32.mrb[0].mxu0
        %v970 = vadd.f32 %v795, %v969
        %v971 = vpop.f32.mrb[0].mxu0
        %v972 = vadd.f32 %v799, %v971
        %v973 = vpop.f32.mrb[0].mxu0
        %v974 = vadd.f32 %v795, %v973
        %v975 = vpop.f32.mrb[0].mxu0
        %v976 = vadd.f32 %v799, %v975
        %977 = vmatprep.mubr.bf16.mxu0 0
        %978 = vmatmul.mubr.bf16.gmra.mrb[0].mxu0 %v743
        %v979 = vpop.f32.mrb[0].mxu0
        %v980 = vadd.f32 %v795, %v979
        %v981 = vpop.f32.mrb[0].mxu0
        %v982 = vadd.f32 %v799, %v981
        %v983 = vpop.f32.mrb[0].mxu0
        %v984 = vadd.f32 %v795, %v983
        %v985 = vpop.f32.mrb[0].mxu0
        %v986 = vadd.f32 %v799, %v985
        %987 = vmatprep.mubr.bf16.mxu0 0
        %988 = vmatmul.mubr.bf16.gmra.mrb[0].mxu0 %v744
        %v989 = vpop.f32.mrb[0].mxu0
        %v990 = vadd.f32 %v795, %v989
        %v991 = vpop.f32.mrb[0].mxu0
        %v992 = vadd.f32 %v799, %v991
        %v993 = vpop.f32.mrb[0].mxu0
        %v994 = vadd.f32 %v795, %v993
        %v995 = vpop.f32.mrb[0].mxu0
        %v996 = vadd.f32 %v799, %v995
        %997 = vmatprep.mubr.bf16.mxu0 0
        %998 = vmatmul.mubr.bf16.gmra.mrb[0].mxu0 %v745
        %v999 = vpop.f32.mrb[0].mxu0
        %v1000 = vadd.f32 %v795, %v999
        %v1001 = vpop.f32.mrb[0].mxu0
        %v1002 = vadd.f32 %v799, %v1001
        %v1003 = vpop.f32.mrb[0].mxu0
        %v1004 = vadd.f32 %v795, %v1003
        %v1005 = vpop.f32.mrb[0].mxu0
        %v1006 = vadd.f32 %v799, %v1005
        %1007 = vmatprep.mubr.bf16.mxu0 0
        %1008 = vmatmul.mubr.bf16.gmra.mrb[0].mxu0 %v746
        %v1009 = vpop.f32.mrb[0].mxu0
        %v1010 = vadd.f32 %v795, %v1009
        %v1011 = vpop.f32.mrb[0].mxu0
        %v1012 = vadd.f32 %v799, %v1011
        %v1013 = vpop.f32.mrb[0].mxu0
        %v1014 = vadd.f32 %v795, %v1013
        %v1015 = vpop.f32.mrb[0].mxu0
        %v1016 = vadd.f32 %v799, %v1015
        %1017 = vmatprep.mubr.bf16.mxu0 0
        %1018 = vmatmul.mubr.bf16.gmra.mrb[0].mxu0 %v747
        %v1019 = vpop.f32.mrb[0].mxu0
        %v1020 = vadd.f32 %v795, %v1019
        %v1021 = vpop.f32.mrb[0].mxu0
        %v1022 = vadd.f32 %v799, %v1021
        %v1023 = vpop.f32.mrb[0].mxu0
        %v1024 = vadd.f32 %v795, %v1023
        %v1025 = vpop.f32.mrb[0].mxu0
        %v1026 = vadd.f32 %v799, %v1025
        %1027 = vmatprep.mubr.bf16.mxu0 0
        %1028 = vmatmul.mubr.bf16.gmra.mrb[0].mxu0 %v748
        %v1029 = vpop.f32.mrb[0].mxu0
        %v1030 = vadd.f32 %v795, %v1029
        %v1031 = vpop.f32.mrb[0].mxu0
        %v1032 = vadd.f32 %v799, %v1031
        %v1033 = vpop.f32.mrb[0].mxu0
        %v1034 = vadd.f32 %v795, %v1033
        %v1035 = vpop.f32.mrb[0].mxu0
        %v1036 = vadd.f32 %v799, %v1035
        %1037 = vmatprep.mubr.bf16.mxu0 0
        %1038 = vmatmul.mubr.bf16.gmra.mrb[0].mxu0 %v749
        %v1039 = vpop.f32.mrb[0].mxu0
        %v1040 = vadd.f32 %v795, %v1039
        %v1041 = vpop.f32.mrb[0].mxu0
        %v1042 = vadd.f32 %v799, %v1041
        %v1043 = vpop.f32.mrb[0].mxu0
        %v1044 = vadd.f32 %v795, %v1043
        %v1045 = vpop.f32.mrb[0].mxu0
        %v1046 = vadd.f32 %v799, %v1045
        %1047 = vmatprep.mubr.bf16.mxu0 0
        %1048 = vmatmul.mubr.bf16.gmra.mrb[0].mxu0 %v750
        %v1049 = vpop.f32.mrb[0].mxu0
        %v1050 = vadd.f32 %v795, %v1049
        %v1051 = vpop.f32.mrb[0].mxu0
        %v1052 = vadd.f32 %v799, %v1051
        %v1053 = vpop.f32.mrb[0].mxu0
        %v1054 = vadd.f32 %v795, %v1053
        %v1055 = vpop.f32.mrb[0].mxu0
        %v1056 = vadd.f32 %v799, %v1055
        %1057 = vmatprep.mubr.bf16.mxu0 0
        %1058 = vmatmul.mubr.bf16.gmra.mrb[0].mxu0 %v751
        %v1059 = vpop.f32.mrb[0].mxu0
        %v1060 = vadd.f32 %v795, %v1059
        %v1061 = vpop.f32.mrb[0].mxu0
        %v1062 = vadd.f32 %v799, %v1061
        %v1063 = vpop.f32.mrb[0].mxu0
        %v1064 = vadd.f32 %v795, %v1063
        %v1065 = vpop.f32.mrb[0].mxu0
        %v1066 = vadd.f32 %v799, %v1065
        %1067 = vmatprep.mubr.bf16.mxu0 0
        %1068 = vmatmul.mubr.bf16.gmra.mrb[0].mxu0 %v752
        %v1069 = vpop.f32.mrb[0].mxu0
        %v1070 = vadd.f32 %v795, %v1069
        %v1071 = vpop.f32.mrb[0].mxu0
        %v1072 = vadd.f32 %v799, %v1071
        %v1073 = vpop.f32.mrb[0].mxu0
        %v1074 = vadd.f32 %v795, %v1073
        %v1075 = vpop.f32.mrb[0].mxu0
        %v1076 = vadd.f32 %v799, %v1075
        %1077 = vmatprep.mubr.bf16.mxu0 0
        %1078 = vmatmul.mubr.bf16.gmra.mrb[0].mxu0 %v753
        %v1079 = vpop.f32.mrb[0].mxu0
        %v1080 = vadd.f32 %v795, %v1079
        %v1081 = vpop.f32.mrb[0].mxu0
        %v1082 = vadd.f32 %v799, %v1081
        %v1083 = vpop.f32.mrb[0].mxu0
        %v1084 = vadd.f32 %v795, %v1083
        %v1085 = vpop.f32.mrb[0].mxu0
        %v1086 = vadd.f32 %v799, %v1085
        %1087 = vmatprep.mubr.bf16.mxu0 0
        %1088 = vmatmul.mubr.bf16.gmra.mrb[0].mxu0 %v754
        %v1089 = vpop.f32.mrb[0].mxu0
        %v1090 = vadd.f32 %v795, %v1089
        %v1091 = vpop.f32.mrb[0].mxu0
        %v1092 = vadd.f32 %v799, %v1091
        %v1093 = vpop.f32.mrb[0].mxu0
        %v1094 = vadd.f32 %v795, %v1093
        %v1095 = vpop.f32.mrb[0].mxu0
        %v1096 = vadd.f32 %v799, %v1095
        %1097 = vmatprep.mubr.bf16.mxu0 0
        %1098 = vmatmul.mubr.bf16.gmra.mrb[0].mxu0 %v755
        %v1099 = vpop.f32.mrb[0].mxu0
        %v1100 = vadd.f32 %v795, %v1099
        %v1101 = vpop.f32.mrb[0].mxu0
        %v1102 = vadd.f32 %v799, %v1101
        %v1103 = vpop.f32.mrb[0].mxu0
        %v1104 = vadd.f32 %v795, %v1103
        %v1105 = vpop.f32.mrb[0].mxu0
        %v1106 = vadd.f32 %v799, %v1105
        %1107 = vmatprep.mubr.bf16.mxu0 0
        %1108 = vmatmul.mubr.bf16.gmra.mrb[0].mxu0 %v756
        %v1109 = vpop.f32.mrb[0].mxu0
        %v1110 = vadd.f32 %v795, %v1109
        %v1111 = vpop.f32.mrb[0].mxu0
        %v1112 = vadd.f32 %v799, %v1111
        %v1113 = vpop.f32.mrb[0].mxu0
        %v1114 = vadd.f32 %v795, %v1113
        %v1115 = vpop.f32.mrb[0].mxu0
        %v1116 = vadd.f32 %v799, %v1115
        %1117 = vmatprep.mubr.bf16.mxu0 0
        %1118 = vmatmul.mubr.bf16.gmra.mrb[0].mxu0 %v757
        %v1119 = vpop.f32.mrb[0].mxu0
        %v1120 = vadd.f32 %v795, %v1119
        %v1121 = vpop.f32.mrb[0].mxu0
        %v1122 = vadd.f32 %v799, %v1121
        %v1123 = vpop.f32.mrb[0].mxu0
        %v1124 = vadd.f32 %v795, %v1123
        %v1125 = vpop.f32.mrb[0].mxu0
        %v1126 = vadd.f32 %v799, %v1125
        %1127 = vdwg.mxu0
        %1128 = vmatprep.subr.bf16.mxu0 0
        %1129 = vmatpush1.bf16.msra.mxu0 %v889
        %1130 = vmatprep.subr.bf16.mxu0 0
        %1131 = vmatpush1.bf16.msra.mxu0 %v892
        %1132 = vmatprep.subr.bf16.mxu0 0
        %1133 = vmatpush1.bf16.msra.mxu0 %v895
        %1134 = vmatprep.subr.bf16.mxu0 0
        %1135 = vmatpush1.bf16.msra.mxu0 %v898
        %1136 = vmatprep.subr.bf16.mxu0 0
        %1137 = vmatpush1.bf16.msra.mxu0 %v901
        %1138 = vmatprep.subr.bf16.mxu0 0
        %1139 = vmatpush1.bf16.msra.mxu0 %v904
        %1140 = vmatprep.subr.bf16.mxu0 0
        %1141 = vmatpush1.bf16.msra.mxu0 %v907
        %1142 = vmatprep.subr.bf16.mxu0 0
        %1143 = vmatpush1.bf16.msra.mxu0 %v910
        %1144 = vmatprep.subr.bf16.mxu0 0
        %1145 = vmatpush1.bf16.msra.mxu0 0
        %1146 = vmatprep.subr.bf16.mxu0 0
        %1147 = vmatpush1.bf16.msra.mxu0 0
        %1148 = vmatprep.subr.bf16.mxu0 0
        %1149 = vmatpush1.bf16.msra.mxu0 0
        %1150 = vmatprep.subr.bf16.mxu0 0
        %1151 = vmatpush1.bf16.msra.mxu0 0
        %1152 = vmatprep.subr.bf16.mxu0 0
        %1153 = vmatpush1.bf16.msra.mxu0 0
        %1154 = vmatprep.subr.bf16.mxu0 0
        %1155 = vmatpush1.bf16.msra.mxu0 0
        %1156 = vmatprep.subr.bf16.mxu0 0
        %1157 = vmatpush1.bf16.msra.mxu0 0
        %1158 = vmatprep.subr.bf16.mxu0 0
        %1159 = vmatpush1.bf16.msra.mxu0 0
        %1160 = vmatprep.mubr.bf16.mxu0 0
        %1161 = vmatmul.mubr.bf16.gmra.mrb[0].mxu0 %v742
        %v1162 = vpop.f32.mrb[0].mxu0
        %v1163 = vadd.f32 %v803, %v1162
        %v1164 = vpop.f32.mrb[0].mxu0
        %v1165 = vpop.f32.mrb[0].mxu0
        %v1166 = vadd.f32 %v803, %v1165
        %v1167 = vpop.f32.mrb[0].mxu0
        %1168 = vmatprep.mubr.bf16.mxu0 0
        %1169 = vmatmul.mubr.bf16.gmra.mrb[0].mxu0 %v743
        %v1170 = vpop.f32.mrb[0].mxu0
        %v1171 = vadd.f32 %v803, %v1170
        %v1172 = vpop.f32.mrb[0].mxu0
        %v1173 = vpop.f32.mrb[0].mxu0
        %v1174 = vadd.f32 %v803, %v1173
        %v1175 = vpop.f32.mrb[0].mxu0
        %1176 = vmatprep.mubr.bf16.mxu0 0
        %1177 = vmatmul.mubr.bf16.gmra.mrb[0].mxu0 %v744
        %v1178 = vpop.f32.mrb[0].mxu0
        %v1179 = vadd.f32 %v803, %v1178
        %v1180 = vpop.f32.mrb[0].mxu0
        %v1181 = vpop.f32.mrb[0].mxu0
        %v1182 = vadd.f32 %v803, %v1181
        %v1183 = vpop.f32.mrb[0].mxu0
        %1184 = vmatprep.mubr.bf16.mxu0 0
        %1185 = vmatmul.mubr.bf16.gmra.mrb[0].mxu0 %v745
        %v1186 = vpop.f32.mrb[0].mxu0
        %v1187 = vadd.f32 %v803, %v1186
        %v1188 = vpop.f32.mrb[0].mxu0
        %v1189 = vpop.f32.mrb[0].mxu0
        %v1190 = vadd.f32 %v803, %v1189
        %v1191 = vpop.f32.mrb[0].mxu0
        %1192 = vmatprep.mubr.bf16.mxu0 0
        %1193 = vmatmul.mubr.bf16.gmra.mrb[0].mxu0 %v746
        %v1194 = vpop.f32.mrb[0].mxu0
        %v1195 = vadd.f32 %v803, %v1194
        %v1196 = vpop.f32.mrb[0].mxu0
        %v1197 = vpop.f32.mrb[0].mxu0
        %v1198 = vadd.f32 %v803, %v1197
        %v1199 = vpop.f32.mrb[0].mxu0
        %1200 = vmatprep.mubr.bf16.mxu0 0
        %1201 = vmatmul.mubr.bf16.gmra.mrb[0].mxu0 %v747
        %v1202 = vpop.f32.mrb[0].mxu0
        %v1203 = vadd.f32 %v803, %v1202
        %v1204 = vpop.f32.mrb[0].mxu0
        %v1205 = vpop.f32.mrb[0].mxu0
        %v1206 = vadd.f32 %v803, %v1205
        %v1207 = vpop.f32.mrb[0].mxu0
        %1208 = vmatprep.mubr.bf16.mxu0 0
        %1209 = vmatmul.mubr.bf16.gmra.mrb[0].mxu0 %v748
        %v1210 = vpop.f32.mrb[0].mxu0
        %v1211 = vadd.f32 %v803, %v1210
        %v1212 = vpop.f32.mrb[0].mxu0
        %v1213 = vpop.f32.mrb[0].mxu0
        %v1214 = vadd.f32 %v803, %v1213
        %v1215 = vpop.f32.mrb[0].mxu0
        %1216 = vmatprep.mubr.bf16.mxu0 0
        %1217 = vmatmul.mubr.bf16.gmra.mrb[0].mxu0 %v749
        %v1218 = vpop.f32.mrb[0].mxu0
        %v1219 = vadd.f32 %v803, %v1218
        %v1220 = vpop.f32.mrb[0].mxu0
        %v1221 = vpop.f32.mrb[0].mxu0
        %v1222 = vadd.f32 %v803, %v1221
        %v1223 = vpop.f32.mrb[0].mxu0
        %1224 = vmatprep.mubr.bf16.mxu0 0
        %1225 = vmatmul.mubr.bf16.gmra.mrb[0].mxu0 %v750
        %v1226 = vpop.f32.mrb[0].mxu0
        %v1227 = vadd.f32 %v803, %v1226
        %v1228 = vpop.f32.mrb[0].mxu0
        %v1229 = vpop.f32.mrb[0].mxu0
        %v1230 = vadd.f32 %v803, %v1229
        %v1231 = vpop.f32.mrb[0].mxu0
        %1232 = vmatprep.mubr.bf16.mxu0 0
        %1233 = vmatmul.mubr.bf16.gmra.mrb[0].mxu0 %v751
        %v1234 = vpop.f32.mrb[0].mxu0
        %v1235 = vadd.f32 %v803, %v1234
        %v1236 = vpop.f32.mrb[0].mxu0
        %v1237 = vpop.f32.mrb[0].mxu0
        %v1238 = vadd.f32 %v803, %v1237
        %v1239 = vpop.f32.mrb[0].mxu0
        %1240 = vmatprep.mubr.bf16.mxu0 0
        %1241 = vmatmul.mubr.bf16.gmra.mrb[0].mxu0 %v752
        %v1242 = vpop.f32.mrb[0].mxu0
        %v1243 = vadd.f32 %v803, %v1242
        %v1244 = vpop.f32.mrb[0].mxu0
        %v1245 = vpop.f32.mrb[0].mxu0
        %v1246 = vadd.f32 %v803, %v1245
        %v1247 = vpop.f32.mrb[0].mxu0
        %1248 = vmatprep.mubr.bf16.mxu0 0
        %1249 = vmatmul.mubr.bf16.gmra.mrb[0].mxu0 %v753
        %v1250 = vpop.f32.mrb[0].mxu0
        %v1251 = vadd.f32 %v803, %v1250
        %v1252 = vpop.f32.mrb[0].mxu0
        %v1253 = vpop.f32.mrb[0].mxu0
        %v1254 = vadd.f32 %v803, %v1253
        %v1255 = vpop.f32.mrb[0].mxu0
        %1256 = vmatprep.mubr.bf16.mxu0 0
        %1257 = vmatmul.mubr.bf16.gmra.mrb[0].mxu0 %v754
        %v1258 = vpop.f32.mrb[0].mxu0
        %v1259 = vadd.f32 %v803, %v1258
        %v1260 = vpop.f32.mrb[0].mxu0
        %v1261 = vpop.f32.mrb[0].mxu0
        %v1262 = vadd.f32 %v803, %v1261
        %v1263 = vpop.f32.mrb[0].mxu0
        %1264 = vmatprep.mubr.bf16.mxu0 0
        %1265 = vmatmul.mubr.bf16.gmra.mrb[0].mxu0 %v755
        %v1266 = vpop.f32.mrb[0].mxu0
        %v1267 = vadd.f32 %v803, %v1266
        %v1268 = vpop.f32.mrb[0].mxu0
        %v1269 = vpop.f32.mrb[0].mxu0
        %v1270 = vadd.f32 %v803, %v1269
        %v1271 = vpop.f32.mrb[0].mxu0
        %1272 = vmatprep.mubr.bf16.mxu0 0
        %1273 = vmatmul.mubr.bf16.gmra.mrb[0].mxu0 %v756
        %v1274 = vpop.f32.mrb[0].mxu0
        %v1275 = vadd.f32 %v803, %v1274
        %v1276 = vpop.f32.mrb[0].mxu0
        %v1277 = vpop.f32.mrb[0].mxu0
        %v1278 = vadd.f32 %v803, %v1277
        %v1279 = vpop.f32.mrb[0].mxu0
        %1280 = vmatprep.mubr.bf16.mxu0 0
        %1281 = vmatmul.mubr.bf16.gmra.mrb[0].mxu0 %v757
        %v1282 = vpop.f32.mrb[0].mxu0
        %v1283 = vadd.f32 %v803, %v1282
        %v1284 = vpop.f32.mrb[0].mxu0
        %v1285 = vpop.f32.mrb[0].mxu0
        %v1286 = vadd.f32 %v803, %v1285
        %v1287 = vpop.f32.mrb[0].mxu0
        %1288 = vdwg.mxu0
        %v1289 = vpack.c.bf16 %v974, %v970
        %v1290 = vpack.c.bf16 %v976, %v972
        %v1291 = vpack.c.bf16 %v1166, %v1163
        %v1292 = vpack.c.bf16 %v984, %v980
        %v1293 = vpack.c.bf16 %v986, %v982
        %v1294 = vpack.c.bf16 %v1174, %v1171
        %v1295 = vpack.c.bf16 %v994, %v990
        %v1296 = vpack.c.bf16 %v996, %v992
        %v1297 = vpack.c.bf16 %v1182, %v1179
        %v1298 = vpack.c.bf16 %v1004, %v1000
        %v1299 = vpack.c.bf16 %v1006, %v1002
        %v1300 = vpack.c.bf16 %v1190, %v1187
        %v1301 = vpack.c.bf16 %v1014, %v1010
        %v1302 = vpack.c.bf16 %v1016, %v1012
        %v1303 = vpack.c.bf16 %v1198, %v1195
        %v1304 = vpack.c.bf16 %v1024, %v1020
        %v1305 = vpack.c.bf16 %v1026, %v1022
        %v1306 = vpack.c.bf16 %v1206, %v1203
        %v1307 = vpack.c.bf16 %v1034, %v1030
        %v1308 = vpack.c.bf16 %v1036, %v1032
        %v1309 = vpack.c.bf16 %v1214, %v1211
        %v1310 = vpack.c.bf16 %v1044, %v1040
        %v1311 = vpack.c.bf16 %v1046, %v1042
        %v1312 = vpack.c.bf16 %v1222, %v1219
        %v1313 = vpack.c.bf16 %v1054, %v1050
        %v1314 = vpack.c.bf16 %v1056, %v1052
        %v1315 = vpack.c.bf16 %v1230, %v1227
        %v1316 = vpack.c.bf16 %v1064, %v1060
        %v1317 = vpack.c.bf16 %v1066, %v1062
        %v1318 = vpack.c.bf16 %v1238, %v1235
        %v1319 = vpack.c.bf16 %v1074, %v1070
        %v1320 = vpack.c.bf16 %v1076, %v1072
        %v1321 = vpack.c.bf16 %v1246, %v1243
        %v1322 = vpack.c.bf16 %v1084, %v1080
        %v1323 = vpack.c.bf16 %v1086, %v1082
        %v1324 = vpack.c.bf16 %v1254, %v1251
        %v1325 = vpack.c.bf16 %v1094, %v1090
        %v1326 = vpack.c.bf16 %v1096, %v1092
        %v1327 = vpack.c.bf16 %v1262, %v1259
        %v1328 = vpack.c.bf16 %v1104, %v1100
        %v1329 = vpack.c.bf16 %v1106, %v1102
        %v1330 = vpack.c.bf16 %v1270, %v1267
        %v1331 = vpack.c.bf16 %v1114, %v1110
        %v1332 = vpack.c.bf16 %v1116, %v1112
        %v1333 = vpack.c.bf16 %v1278, %v1275
        %v1334 = vpack.c.bf16 %v1124, %v1120
        %v1335 = vpack.c.bf16 %v1126, %v1122
        %v1336 = vpack.c.bf16 %v1286, %v1283
        %v1385 = vunpack.c.l.b16 %v1289
        %v1386 = vunpack.c.l.b16 %v1290
        %v1387 = vunpack.c.l.b16 %v1291
        %v1388 = vunpack.c.h.b16 %v1289
        %v1389 = vunpack.c.h.b16 %v1290
        %v1390 = vunpack.c.h.b16 %v1291
        %v1391 = vunpack.c.l.b16 %v1292
        %v1392 = vunpack.c.l.b16 %v1293
        %v1393 = vunpack.c.l.b16 %v1294
        %v1394 = vunpack.c.h.b16 %v1292
        %v1395 = vunpack.c.h.b16 %v1293
        %v1396 = vunpack.c.h.b16 %v1294
        %v1397 = vunpack.c.l.b16 %v1295
        %v1398 = vunpack.c.l.b16 %v1296
        %v1399 = vunpack.c.l.b16 %v1297
        %v1400 = vunpack.c.h.b16 %v1295
        %v1401 = vunpack.c.h.b16 %v1296
        %v1402 = vunpack.c.h.b16 %v1297
        %v1403 = vunpack.c.l.b16 %v1298
        %v1404 = vunpack.c.l.b16 %v1299
        %v1405 = vunpack.c.l.b16 %v1300
        %v1406 = vunpack.c.h.b16 %v1298
        %v1407 = vunpack.c.h.b16 %v1299
        %v1408 = vunpack.c.h.b16 %v1300
        %v1409 = vunpack.c.l.b16 %v1301
        %v1410 = vunpack.c.l.b16 %v1302
        %v1411 = vunpack.c.l.b16 %v1303
        %v1412 = vunpack.c.h.b16 %v1301
        %v1413 = vunpack.c.h.b16 %v1302
        %v1414 = vunpack.c.h.b16 %v1303
        %v1415 = vunpack.c.l.b16 %v1304
        %v1416 = vunpack.c.l.b16 %v1305
        %v1417 = vunpack.c.l.b16 %v1306
        %v1418 = vunpack.c.h.b16 %v1304
        %v1419 = vunpack.c.h.b16 %v1305
        %v1420 = vunpack.c.h.b16 %v1306
        %v1421 = vunpack.c.l.b16 %v1307
        %v1422 = vunpack.c.l.b16 %v1308
        %v1423 = vunpack.c.l.b16 %v1309
        %v1424 = vunpack.c.h.b16 %v1307
        %v1425 = vunpack.c.h.b16 %v1308
        %v1426 = vunpack.c.h.b16 %v1309
        %v1427 = vunpack.c.l.b16 %v1310
        %v1428 = vunpack.c.l.b16 %v1311
        %v1429 = vunpack.c.l.b16 %v1312
        %v1430 = vunpack.c.h.b16 %v1310
        %v1431 = vunpack.c.h.b16 %v1311
        %v1432 = vunpack.c.h.b16 %v1312
        %v1433 = vunpack.c.l.b16 %v1313
        %v1434 = vunpack.c.l.b16 %v1314
        %v1435 = vunpack.c.l.b16 %v1315
        %v1436 = vunpack.c.h.b16 %v1313
        %v1437 = vunpack.c.h.b16 %v1314
        %v1438 = vunpack.c.h.b16 %v1315
        %v1439 = vunpack.c.l.b16 %v1316
        %v1440 = vunpack.c.l.b16 %v1317
        %v1441 = vunpack.c.l.b16 %v1318
        %v1442 = vunpack.c.h.b16 %v1316
        %v1443 = vunpack.c.h.b16 %v1317
        %v1444 = vunpack.c.h.b16 %v1318
        %v1445 = vunpack.c.l.b16 %v1319
        %v1446 = vunpack.c.l.b16 %v1320
        %v1447 = vunpack.c.l.b16 %v1321
        %v1448 = vunpack.c.h.b16 %v1319
        %v1449 = vunpack.c.h.b16 %v1320
        %v1450 = vunpack.c.h.b16 %v1321
        %v1451 = vunpack.c.l.b16 %v1322
        %v1452 = vunpack.c.l.b16 %v1323
        %v1453 = vunpack.c.l.b16 %v1324
        %v1454 = vunpack.c.h.b16 %v1322
        %v1455 = vunpack.c.h.b16 %v1323
        %v1456 = vunpack.c.h.b16 %v1324
        %v1457 = vunpack.c.l.b16 %v1325
        %v1458 = vunpack.c.l.b16 %v1326
        %v1459 = vunpack.c.l.b16 %v1327
        %v1460 = vunpack.c.h.b16 %v1325
        %v1461 = vunpack.c.h.b16 %v1326
        %v1462 = vunpack.c.h.b16 %v1327
        %v1463 = vunpack.c.l.b16 %v1328
        %v1464 = vunpack.c.l.b16 %v1329
        %v1465 = vunpack.c.l.b16 %v1330
        %v1466 = vunpack.c.h.b16 %v1328
        %v1467 = vunpack.c.h.b16 %v1329
        %v1468 = vunpack.c.h.b16 %v1330
        %v1469 = vunpack.c.l.b16 %v1331
        %v1470 = vunpack.c.l.b16 %v1332
        %v1471 = vunpack.c.l.b16 %v1333
        %v1472 = vunpack.c.h.b16 %v1331
        %v1473 = vunpack.c.h.b16 %v1332
        %v1474 = vunpack.c.h.b16 %v1333
        %v1475 = vunpack.c.l.b16 %v1334
        %v1476 = vunpack.c.l.b16 %v1335
        %v1477 = vunpack.c.l.b16 %v1336
        %v1478 = vunpack.c.h.b16 %v1334
        %v1479 = vunpack.c.h.b16 %v1335
        %v1480 = vunpack.c.h.b16 %v1336
        %v1481 = vpack.c.b16 %v1386, %v1385
        %v1482 = vpack.c.b16 %v1387, %v1387
        %v1483 = vpack.c.b16 %v1389, %v1388
        %v1484 = vpack.c.b16 %v1390, %v1390
        %v1485 = vpack.c.b16 %v1392, %v1391
        %v1486 = vpack.c.b16 %v1393, %v1393
        %v1487 = vpack.c.b16 %v1395, %v1394
        %v1488 = vpack.c.b16 %v1396, %v1396
        %v1489 = vpack.c.b16 %v1398, %v1397
        %v1490 = vpack.c.b16 %v1399, %v1399
        %v1491 = vpack.c.b16 %v1401, %v1400
        %v1492 = vpack.c.b16 %v1402, %v1402
        %v1493 = vpack.c.b16 %v1404, %v1403
        %v1494 = vpack.c.b16 %v1405, %v1405
        %v1495 = vpack.c.b16 %v1407, %v1406
        %v1496 = vpack.c.b16 %v1408, %v1408
        %v1497 = vpack.c.b16 %v1410, %v1409
        %v1498 = vpack.c.b16 %v1411, %v1411
        %v1499 = vpack.c.b16 %v1413, %v1412
        %v1500 = vpack.c.b16 %v1414, %v1414
        %v1501 = vpack.c.b16 %v1416, %v1415
        %v1502 = vpack.c.b16 %v1417, %v1417
        %v1503 = vpack.c.b16 %v1419, %v1418
        %v1504 = vpack.c.b16 %v1420, %v1420
        %v1505 = vpack.c.b16 %v1422, %v1421
        %v1506 = vpack.c.b16 %v1423, %v1423
        %v1507 = vpack.c.b16 %v1425, %v1424
        %v1508 = vpack.c.b16 %v1426, %v1426
        %v1509 = vpack.c.b16 %v1428, %v1427
        %v1510 = vpack.c.b16 %v1429, %v1429
        %v1511 = vpack.c.b16 %v1431, %v1430
        %v1512 = vpack.c.b16 %v1432, %v1432
        %v1513 = vpack.c.b16 %v1434, %v1433
        %v1514 = vpack.c.b16 %v1435, %v1435
        %v1515 = vpack.c.b16 %v1437, %v1436
        %v1516 = vpack.c.b16 %v1438, %v1438
        %v1517 = vpack.c.b16 %v1440, %v1439
        %v1518 = vpack.c.b16 %v1441, %v1441
        %v1519 = vpack.c.b16 %v1443, %v1442
        %v1520 = vpack.c.b16 %v1444, %v1444
        %v1521 = vpack.c.b16 %v1446, %v1445
        %v1522 = vpack.c.b16 %v1447, %v1447
        %v1523 = vpack.c.b16 %v1449, %v1448
        %v1524 = vpack.c.b16 %v1450, %v1450
        %v1525 = vpack.c.b16 %v1452, %v1451
        %v1526 = vpack.c.b16 %v1453, %v1453
        %v1527 = vpack.c.b16 %v1455, %v1454
        %v1528 = vpack.c.b16 %v1456, %v1456
        %v1529 = vpack.c.b16 %v1458, %v1457
        %v1530 = vpack.c.b16 %v1459, %v1459
        %v1531 = vpack.c.b16 %v1461, %v1460
        %v1532 = vpack.c.b16 %v1462, %v1462
        %v1533 = vpack.c.b16 %v1464, %v1463
        %v1534 = vpack.c.b16 %v1465, %v1465
        %v1535 = vpack.c.b16 %v1467, %v1466
        %v1536 = vpack.c.b16 %v1468, %v1468
        %v1537 = vpack.c.b16 %v1470, %v1469
        %v1538 = vpack.c.b16 %v1471, %v1471
        %v1539 = vpack.c.b16 %v1473, %v1472
        %v1540 = vpack.c.b16 %v1474, %v1474
        %v1541 = vpack.c.b16 %v1476, %v1475
        %v1542 = vpack.c.b16 %v1477, %v1477
        %v1543 = vpack.c.b16 %v1479, %v1478
        %v1544 = vpack.c.b16 %v1480, %v1480
        %1609 = vst [vmem:[%s275] sm:$0xff] %v1481
        %1610 = vst [vmem:[%s275 + $0x8] sm:$0xf] %v1482
        %1611 = vst [vmem:[%s275 + $0xc] sm:$0xff] %v1483
        %1612 = vst [vmem:[%s275 + $0x14] sm:$0xf] %v1484
        %1613 = vst [vmem:[%s275 + $0x18] sm:$0xff] %v1485
        %1614 = vst [vmem:[%s275 + $0x20] sm:$0xf] %v1486
        %1615 = vst [vmem:[%s275 + $0x24] sm:$0xff] %v1487
        %1616 = vst [vmem:[%s275 + $0x2c] sm:$0xf] %v1488
        %1617 = vst [vmem:[%s275 + $0x30] sm:$0xff] %v1489
        %1618 = vst [vmem:[%s275 + $0x38] sm:$0xf] %v1490
        %1619 = vst [vmem:[%s275 + $0x3c] sm:$0xff] %v1491
        %1620 = vst [vmem:[%s275 + $0x44] sm:$0xf] %v1492
        %1621 = vst [vmem:[%s275 + $0x48] sm:$0xff] %v1493
        %1622 = vst [vmem:[%s275 + $0x50] sm:$0xf] %v1494
        %1623 = vst [vmem:[%s275 + $0x54] sm:$0xff] %v1495
        %1624 = vst [vmem:[%s275 + $0x5c] sm:$0xf] %v1496
        %1625 = vst [vmem:[%s275 + $0x60] sm:$0xff] %v1497
        %1626 = vst [vmem:[%s275 + $0x68] sm:$0xf] %v1498
        %1627 = vst [vmem:[%s275 + $0x6c] sm:$0xff] %v1499
        %1628 = vst [vmem:[%s275 + $0x74] sm:$0xf] %v1500
        %1629 = vst [vmem:[%s275 + $0x78] sm:$0xff] %v1501
        %1630 = vst [vmem:[%s275 + $0x80] sm:$0xf] %v1502
        %1631 = vst [vmem:[%s275 + $0x84] sm:$0xff] %v1503
        %1632 = vst [vmem:[%s275 + $0x8c] sm:$0xf] %v1504
        %1633 = vst [vmem:[%s275 + $0x90] sm:$0xff] %v1505
        %1634 = vst [vmem:[%s275 + $0x98] sm:$0xf] %v1506
        %1635 = vst [vmem:[%s275 + $0x9c] sm:$0xff] %v1507
        %1636 = vst [vmem:[%s275 + $0xa4] sm:$0xf] %v1508
        %1637 = vst [vmem:[%s275 + $0xa8] sm:$0xff] %v1509
        %1638 = vst [vmem:[%s275 + $0xb0] sm:$0xf] %v1510
        %1639 = vst [vmem:[%s275 + $0xb4] sm:$0xff] %v1511
        %1640 = vst [vmem:[%s275 + $0xbc] sm:$0xf] %v1512
        %1641 = vst [vmem:[%s275 + $0xc0] sm:$0xff] %v1513
        %1642 = vst [vmem:[%s275 + $0xc8] sm:$0xf] %v1514
        %1643 = vst [vmem:[%s275 + $0xcc] sm:$0xff] %v1515
        %1644 = vst [vmem:[%s275 + $0xd4] sm:$0xf] %v1516
        %1645 = vst [vmem:[%s275 + $0xd8] sm:$0xff] %v1517
        %1646 = vst [vmem:[%s275 + $0xe0] sm:$0xf] %v1518
        %1647 = vst [vmem:[%s275 + $0xe4] sm:$0xff] %v1519
        %1648 = vst [vmem:[%s275 + $0xec] sm:$0xf] %v1520
        %1649 = vst [vmem:[%s275 + $0xf0] sm:$0xff] %v1521
        %1650 = vst [vmem:[%s275 + $0xf8] sm:$0xf] %v1522
        %1651 = vst [vmem:[%s275 + $0xfc] sm:$0xff] %v1523
        %1652 = vst [vmem:[%s275 + $0x104] sm:$0xf] %v1524
        %1653 = vst [vmem:[%s275 + $0x108] sm:$0xff] %v1525
        %1654 = vst [vmem:[%s275 + $0x110] sm:$0xf] %v1526
        %1655 = vst [vmem:[%s275 + $0x114] sm:$0xff] %v1527
        %1656 = vst [vmem:[%s275 + $0x11c] sm:$0xf] %v1528
        %1657 = vst [vmem:[%s275 + $0x120] sm:$0xff] %v1529
        %1658 = vst [vmem:[%s275 + $0x128] sm:$0xf] %v1530
        %1659 = vst [vmem:[%s275 + $0x12c] sm:$0xff] %v1531
        %1660 = vst [vmem:[%s275 + $0x134] sm:$0xf] %v1532
        %1661 = vst [vmem:[%s275 + $0x138] sm:$0xff] %v1533
        %1662 = vst [vmem:[%s275 + $0x140] sm:$0xf] %v1534
        %1663 = vst [vmem:[%s275 + $0x144] sm:$0xff] %v1535
        %1664 = vst [vmem:[%s275 + $0x14c] sm:$0xf] %v1536
        %1665 = vst [vmem:[%s275 + $0x150] sm:$0xff] %v1537
        %1666 = vst [vmem:[%s275 + $0x158] sm:$0xf] %v1538
        %1667 = vst [vmem:[%s275 + $0x15c] sm:$0xff] %v1539
        %1668 = vst [vmem:[%s275 + $0x164] sm:$0xf] %v1540
        %1669 = vst [vmem:[%s275 + $0x168] sm:$0xff] %v1541
        %1670 = vst [vmem:[%s275 + $0x170] sm:$0xf] %v1542
        %1671 = vst [vmem:[%s275 + $0x174] sm:$0xff] %v1543
        %1672 = vst [vmem:[%s275 + $0x17c] sm:$0xf] %v1544
        %s1673 = sand.u32 %s157, 1
        %s1674 = scalar_lea.sflag [#allocation4], %s1673
        %s1675 = sand.u32 %s157, 1
        %s1676 = smul.addr %s1675, 384
        %s1677 = scalar_lea.vmem [#allocation7], %s1676
        // Predicated region
        $region49: #{tpu_custom_call.1} parent=39 // pred_check
          %p1678 = pneg %p167
        $region50: #{tpu_custom_call.1} parent=39 // pred_check_branch
          %1680 = sbr.rel (%p1678) target = $region52
        $region51: #{tpu_custom_call.1} parent=39 // pred_region
          %s1681 = smul.u32 32, %s28
          %s1683 = ssub.s32 6144, 6144
          %1684 = vsyncadd %s1674, %s1683
          %s1685 = smul.addr %s1681, 3
          %s1686 = smul.addr %s27, 96
          %s1687 = sadd.s32 %s1685, %s1686
          %s1688 = smul.addr %s1687, 64
          %s1689 = scalar_lea.hbm %s5, %s1688
          %s1690 = sshll.u32 %s1677, 4
          %s1691 = int_to_ptr.vmem [resolvable:$true] %s1690
          %1696 = dma.vmem_to_hbm [thread:$0]  %s1691, 6144, %s1689, %s1674, 192, 192, 12
        $region52: #{tpu_custom_call.1} parent=39 // pred_fallthru
          _
      $region40: #{tpu_custom_call.1} parent=5 // pred_fallthru
        _
      %p1697 = scmp.le.s32.totalorder 2, %s18
      // Predicated region
      $region53: #{tpu_custom_call.1} parent=5 // pred_check
        %p1698 = pneg %p1697
      $region54: #{tpu_custom_call.1} parent=5 // pred_check_branch
        %1700 = sbr.rel (%p1698) target = $region56
      $region55: #{tpu_custom_call.1} parent=5 // pred_region
        %s1701 = ssub.s32 %s18, 2
        // Predicated region
        $region57: #{tpu_custom_call.1} parent=55 // pred_check
          %p1702 = pneg %p173
        $region58: #{tpu_custom_call.1} parent=55 // pred_check_branch
          %1704 = sbr.rel (%p1702) target = $region60
        $region59: #{tpu_custom_call.1} parent=55 // pred_region
          %s1705 = sand.u32 %s158, 1
          %s1706 = scalar_lea.sflag [#allocation4], %s1705
          %s1707 = sand.u32 %s158, 1
          %s1708 = smul.addr %s1707, 384
          %s1709 = scalar_lea.vmem [#allocation7], %s1708
          %1710 = dma.done %s1706, 6144
        $region60: #{tpu_custom_call.1} parent=55 // pred_fallthru
          _
      $region56: #{tpu_custom_call.1} parent=5 // pred_fallthru
        _
    $region6: #{tpu_custom_call.1} parent=1 // loop_footer
      %s22 = sadd.s32 1, %s18
    $region7: #{tpu_custom_call.1} parent=1 // loop_footer_branch
      %17 = sbr.rel target = $region3
    $region8: #{tpu_custom_call.1} parent=1 // loop_exit
      _
    %1711 = vsyncpa [#allocation3], 1
    %s1712 = scalar_lea.sflag [#allocation3], 1
    %1713 = vsyncpa %s1712, 1
    %1714 = vsyncpa [#allocation6], 1
    %1715 = vsyncpa [#allocation4], 1
    %s1716 = scalar_lea.sflag [#allocation4], 1
    %1717 = vsyncpa %s1716, 1

</llo_original>
